<compile_context>
chip_gen: v5e
topology: v5e:2x2
jax: 0.10.0
libtpu: 0.0.40
codegen_flags: <defaults>
</compile_context>

<pallas_src>
import math

import jax
import jax.numpy as jnp
from jax.experimental import pallas as pl

# ----------------------- synthetic, deterministic parameters -----------------------
N_IN = 32            # metalens_optics_param['input_shape']
N_OUT = 16           # metalens_optics_param['output_shape']  (PSF size)
DX_IN = 1.0e-6       # input_dx
DX_OUT = 2.0e-6      # output_dx
LAMBDA = 633e-9      # lambda
Z_PROP = 1.0e-3      # z
DELTA_N = 0.5        # Delta_n
PAD_SCALE = 2        # pad_scale (unused with direct DFT propagation)
NUM_PARTITION = 16   # num_partition
NUM_LEVEL = 4        # num_level
DOE_TYPE = "2d"      # doe_type
USE_LITHO_MODEL = False

B, C, H, W = 2, 3, 16, 16              # batch_target shape (NCHW)
KH = KW = N_OUT                        # PSF kernel size
PH0, PH1 = (KH - 1) // 2, KH // 2      # 'same' pad rows (more on the bottom)
PW0, PW1 = (KW - 1) // 2, KW // 2      # 'same' pad cols (more on the right)
HP = H + KH - 1                        # 31 padded rows
WP = W + KW - 1                        # 31 "true" padded cols
WP_PAD = 32                            # pad 31 -> 32 (clean sublane/lane tiling)
K_DIM = KH * WP_PAD                    # 512  block-Toeplitz contraction dim
M_DIM = B * C * H                      # 96   block-Toeplitz M dim

READ_STD = 0.004                       # sensor_noise arg 1
SHOT_STD = 0.02                        # sensor_noise arg 2

K_WAVE = 2.0 * math.pi / LAMBDA
PSF_SCALE = float((DX_IN * DX_IN / (LAMBDA * Z_PROP)) ** 2)   # |1/(i lam z)|^2 * dx^4


# ================================ Pallas kernel 1 ===================================
# Fresnel propagation:  Out = Kx @ (A * exp(i*phase)) @ Ky^T   (complex, separable DFT)
# written as block-stacked real matmuls:
#   ts = [axr; axi] @ ur + [-axi; axr] @ ui           = [tr; ti]          (2*N_OUT, N_IN)
#   r1 = ts @ ayr = [tr@ayr; ti@ayr],  r2 = ts @ ayi  = [tr@ayi; ti@ayi]  (2*N_OUT, N_OUT)
#   out_r = r1[:N_OUT] - r2[N_OUT:],  out_i = r2[:N_OUT] + r1[N_OUT:]
# then psf = |out|^2 * PSF_SCALE.
def psf_kernel(hgt_ref, qph_ref, amp_ref, m1a_ref, m1b_ref, ayr_ref, ayi_ref, psf_ref):
    ph = (K_WAVE * DELTA_N) * hgt_ref[...] + qph_ref[...]   # total input-plane phase
    amp = amp_ref[...]                                      # circular aperture
    ur = amp * jnp.cos(ph)                                  # field real part (N_IN,N_IN)
    ui = amp * jnp.sin(ph)                                  # field imag part

    ts = (jnp.dot(m1a_ref[...], ur, preferred_element_type=jnp.float32)
          + jnp.dot(m1b_ref[...], ui, preferred_element_type=jnp.float32))

    r1 = jnp.dot(ts, ayr_ref[...], preferred_element_type=jnp.float32)
    r2 = jnp.dot(ts, ayi_ref[...], preferred_element_type=jnp.float32)

    out_r = r1[:N_OUT, :] - r2[N_OUT:, :]
    out_i = r2[:N_OUT, :] + r1[N_OUT:, :]
    psf_ref[...] = (out_r * out_r + out_i * out_i) * PSF_SCALE


def compute_psf_pallas(print_pred, quad_phase, aperture, m1a, m1b, ayr, ayi):
    # Gridless call: all operands (< 200 KB total) live as whole-array VMEM blocks.
    return pl.pallas_call(
        psf_kernel,
        out_shape=jax.ShapeDtypeStruct((N_OUT, N_OUT), jnp.float32),
    )(print_pred, quad_phase, aperture, m1a, m1b, ayr, ayi)


# ================================ Pallas kernel 2 ===================================
# 'same' conv2d(batch_target, psf) for all B*C images as a single block-Toeplitz matmul
# (96, 512) @ (512, 16), followed by sensor noise (one pre-drawn standard-normal field,
# scaled in-kernel by the signal-dependent sigma).
def conv_noise_kernel(col_ref, w_ref, z_ref, out_ref):
    img = jnp.dot(col_ref[...], w_ref[...], preferred_element_type=jnp.float32)
    # sensor_noise(img, 0.004, 0.02): gaussian with std = sqrt(read^2 + shot^2 * img)
    sigma = jnp.sqrt(READ_STD * READ_STD
                     + SHOT_STD * SHOT_STD * jnp.maximum(img, 0.0))
    out_ref[...] = img + sigma * z_ref[...]


def conv2d_with_noise_pallas(col, wmat, z):
    return pl.pallas_call(
        conv_noise_kernel,
        out_shape=jax.ShapeDtypeStruct((M_DIM, W), jnp.float32),
    )(col, wmat, z)


# ================================ glue (parameter setup) ===========================
def make_doe_height():
    """DOE.get_doe_sample(): quantized (num_level) Fresnel-lens height map with
    NUM_PARTITION x NUM_PARTITION designable pixels, upsampled to (N_IN, N_IN)."""
    p = NUM_PARTITION
    c = (jnp.arange(p) - (p - 1) / 2.0) * (DX_IN * N_IN / p)
    xx, yy = jnp.meshgrid(c, c, indexing="ij")
    phi = (-jnp.pi / (LAMBDA * Z_PROP)) * (xx ** 2 + yy ** 2)      # ideal lens phase
    phi_wrapped = jnp.mod(phi, 2.0 * jnp.pi)
    q = jnp.floor(phi_wrapped / (2.0 * jnp.pi) * NUM_LEVEL)
    phi_q = q * (2.0 * jnp.pi / NUM_LEVEL)
    height = phi_q * LAMBDA / (2.0 * jnp.pi * DELTA_N)             # height map [m]
    rep = N_IN // p
    height = jnp.repeat(jnp.repeat(height, rep, axis=0), rep, axis=1)
    return height.astype(jnp.float32)                              # (N_IN, N_IN)


def make_propagation_constants():
    """FreeSpaceFwd setup: quadratic Fresnel phase, aperture, and the block-stacked
    real forms of the separable DFT matrices Kx / Ky^T (identical x/y grids)."""
    xin = (jnp.arange(N_IN) - (N_IN - 1) / 2.0) * DX_IN
    xout = (jnp.arange(N_OUT) - (N_OUT - 1) / 2.0) * DX_OUT
    xi, yi = jnp.meshgrid(xin, xin, indexing="ij")
    quad_phase = (K_WAVE * (xi ** 2 + yi ** 2) / (2.0 * Z_PROP)).astype(jnp.float32)
    aperture = ((xi ** 2 + yi ** 2) <= (N_IN * DX_IN / 2.0) ** 2).astype(jnp.float32)
    arg = -K_WAVE * jnp.outer(xout, xin) / Z_PROP                  # (N_OUT, N_IN)
    axr = jnp.cos(arg).astype(jnp.float32)
    axi = jnp.sin(arg).astype(jnp.float32)
    m1a = jnp.concatenate([axr, axi], axis=0)                      # (2*N_OUT, N_IN)
    m1b = jnp.concatenate([-axi, axr], axis=0)                     # (2*N_OUT, N_IN)
    ayr = axr.T.astype(jnp.float32)                                # Ky^T real (N_IN,N_OUT)
    ayi = axi.T.astype(jnp.float32)                                # Ky^T imag (N_IN,N_OUT)
    return quad_phase, aperture, m1a, m1b, ayr, ayi


def _toeplitz_weight(psf):
    """Block-Toeplitz weight: W[(i, jp), x] = psf[i, jp - x] for 0 <= jp - x < KW.
    Tiny gather+where, fused by XLA under jit; shape (KH*WP_PAD, W)."""
    jp = jnp.arange(WP_PAD)[:, None]
    x = jnp.arange(W)[None, :]
    d = jp - x
    valid = (d >= 0) & (d < KW)
    toe = jnp.where(valid[None, :, :], psf[:, jnp.clip(d, 0, KW - 1)], 0.0)
    return toe.reshape(K_DIM, W).astype(jnp.float32)


def _im2col(batch_target):
    """Zero-pad for 'same' correlation and gather the KH shifted row-slabs so the
    conv becomes one (B*C*H, KH*WP_PAD) @ (KH*WP_PAD, W) matmul."""
    bc = batch_target.reshape(B * C, H, W).astype(jnp.float32)
    padded = jnp.pad(bc, ((0, 0), (PH0, PH1), (PW0, PW1 + (WP_PAD - WP))))
    ridx = jnp.arange(H)[:, None] + jnp.arange(KH)[None, :]        # (H, KH)
    col = padded[:, ridx, :]                                       # (B*C, H, KH, WP_PAD)
    return col.reshape(M_DIM, K_DIM)


@jax.jit
def _psf_pipeline(print_pred, quad_phase, aperture, m1a, m1b, ayr, ayi):
    psf = compute_psf_pallas(print_pred, quad_phase, aperture, m1a, m1b, ayr, ayi)
    return psf, jnp.sum(psf)


@jax.jit
def _forward_pipeline(batch_target, key, print_pred, quad_phase, aperture,
                      m1a, m1b, ayr, ayi):
    psf = compute_psf_pallas(print_pred, quad_phase, aperture, m1a, m1b, ayr, ayi)
    psf_sum = jnp.sum(psf)
    wmat = _toeplitz_weight(psf)
    col = _im2col(batch_target)
    z = jax.random.normal(key, (M_DIM, W), dtype=jnp.float32)      # one noise draw
    sensor = conv2d_with_noise_pallas(col, wmat, z).reshape(B, C, H, W)
    return sensor, psf, psf_sum


class CameraPipelinePallas:
    """Pallas port of CameraPipeline (forward camera model)."""

    def __init__(self):
        self.use_litho_model_flag = USE_LITHO_MODEL
        self.height = make_doe_height()                            # DOE sample (mask)
        (self.quad_phase, self.aperture,
         self.m1a, self.m1b, self.ayr, self.ayi) = make_propagation_constants()

    def _print_pred(self, litho_model):
        mask = self.height
        if self.use_litho_model_flag and litho_model is not None:
            return litho_model(mask), mask
        return mask, mask

    def get_psf(self, litho_model=None):
        print_pred, mask = self._print_pred(litho_model)
        psf, psf_sum = _psf_pipeline(print_pred, self.quad_phase, self.aperture,
                                     self.m1a, self.m1b, self.ayr, self.ayi)
        # Mirrors `if torch.isnan(psf).any(): raise` -- host sync lives only here,
        # outside the jitted forward hot path.
        if bool(jnp.isnan(psf).any()):
            raise RuntimeError("NaN in PSF")
        return psf, psf_sum, print_pred, mask

    def forward(self, batch_target, litho_model=None, key=None):
        if key is None:
            key = jax.random.PRNGKey(0)
        print_pred, mask = self._print_pred(litho_model)
        sensor_img, psf, psf_sum = _forward_pipeline(
            batch_target, key, print_pred, self.quad_phase, self.aperture,
            self.m1a, self.m1b, self.ayr, self.ayi)
        return sensor_img, psf, psf_sum, print_pred, mask


if __name__ == "__main__":
    key = jax.random.PRNGKey(0)
    k_img, k_noise = jax.random.split(key)
    batch_target = jax.random.uniform(k_img, (B, C, H, W), dtype=jnp.float32)

    cam = CameraPipelinePallas()
    sensor_img, psf, psf_sum, print_pred, mask = cam.forward(
        batch_target, litho_model=None, key=k_noise)
    jax.block_until_ready((sensor_img, psf, psf_sum, print_pred, mask))

    assert sensor_img.shape == (B, C, H, W)
    assert psf.shape == (N_OUT, N_OUT)
    assert psf_sum.shape == ()
    # NaN checks kept outside the jitted hot path.
    assert not bool(jnp.isnan(psf).any())
    assert not bool(jnp.isnan(sensor_img).any())
    print("KERNEL_OK")
</pallas_src>

<mosaic_0001>
module attributes {stable_mosaic.version = 11 : i64} {
  func.func @psf_kernel(%arg0: memref<32x32xf32, #tpu.memory_space<vmem>>, %arg1: memref<32x32xf32, #tpu.memory_space<vmem>>, %arg2: memref<32x32xf32, #tpu.memory_space<vmem>>, %arg3: memref<32x32xf32, #tpu.memory_space<vmem>>, %arg4: memref<32x32xf32, #tpu.memory_space<vmem>>, %arg5: memref<32x16xf32, #tpu.memory_space<vmem>>, %arg6: memref<32x16xf32, #tpu.memory_space<vmem>>, %arg7: memref<16x16xf32, #tpu.memory_space<vmem>>) attributes {dimension_semantics = [], scalar_prefetch = 0 : i64, scratch_operands = 0 : i64, tpu.core_type = #tpu.core_type<tc>} {
    %c0 = arith.constant 0 : index
    %c0_0 = arith.constant 0 : index
    %0 = vector.load %arg0[%c0, %c0_0] : memref<32x32xf32, #tpu.memory_space<vmem>>, vector<32x32xf32>
    %cst = arith.constant 4963021.5 : f32
    %1 = vector.broadcast %cst : f32 to vector<32x32xf32>
    %2 = arith.mulf %1, %0 : vector<32x32xf32>
    %c0_1 = arith.constant 0 : index
    %c0_2 = arith.constant 0 : index
    %3 = vector.load %arg1[%c0_1, %c0_2] : memref<32x32xf32, #tpu.memory_space<vmem>>, vector<32x32xf32>
    %4 = arith.addf %2, %3 : vector<32x32xf32>
    %c0_3 = arith.constant 0 : index
    %c0_4 = arith.constant 0 : index
    %5 = vector.load %arg2[%c0_3, %c0_4] : memref<32x32xf32, #tpu.memory_space<vmem>>, vector<32x32xf32>
    %6 = math.cos %4 : vector<32x32xf32>
    %7 = arith.mulf %5, %6 : vector<32x32xf32>
    %8 = math.sin %4 : vector<32x32xf32>
    %9 = arith.mulf %5, %8 : vector<32x32xf32>
    %c0_5 = arith.constant 0 : index
    %c0_6 = arith.constant 0 : index
    %10 = vector.load %arg3[%c0_5, %c0_6] : memref<32x32xf32, #tpu.memory_space<vmem>>, vector<32x32xf32>
    %cst_7 = arith.constant dense<0.000000e+00> : vector<32x32xf32>
    %11 = tpu.matmul %10, %7, %cst_7 {dimension_numbers = #tpu.dot_dimension_numbers<[1], [0], [0], [1], [0, 0, 1, 1], [], []>} : vector<32x32xf32>, vector<32x32xf32>, vector<32x32xf32> -> vector<32x32xf32>
    %c0_8 = arith.constant 0 : index
    %c0_9 = arith.constant 0 : index
    %12 = vector.load %arg4[%c0_8, %c0_9] : memref<32x32xf32, #tpu.memory_space<vmem>>, vector<32x32xf32>
    %cst_10 = arith.constant dense<0.000000e+00> : vector<32x32xf32>
    %13 = tpu.matmul %12, %9, %cst_10 {dimension_numbers = #tpu.dot_dimension_numbers<[1], [0], [0], [1], [0, 0, 1, 1], [], []>} : vector<32x32xf32>, vector<32x32xf32>, vector<32x32xf32> -> vector<32x32xf32>
    %14 = arith.addf %11, %13 : vector<32x32xf32>
    %c0_11 = arith.constant 0 : index
    %c0_12 = arith.constant 0 : index
    %15 = vector.load %arg5[%c0_11, %c0_12] : memref<32x16xf32, #tpu.memory_space<vmem>>, vector<32x16xf32>
    %cst_13 = arith.constant dense<0.000000e+00> : vector<32x16xf32>
    %16 = tpu.matmul %14, %15, %cst_13 {dimension_numbers = #tpu.dot_dimension_numbers<[1], [0], [0], [1], [0, 0, 1, 1], [], []>} : vector<32x32xf32>, vector<32x16xf32>, vector<32x16xf32> -> vector<32x16xf32>
    %c0_14 = arith.constant 0 : index
    %c0_15 = arith.constant 0 : index
    %17 = vector.load %arg6[%c0_14, %c0_15] : memref<32x16xf32, #tpu.memory_space<vmem>>, vector<32x16xf32>
    %cst_16 = arith.constant dense<0.000000e+00> : vector<32x16xf32>
    %18 = tpu.matmul %14, %17, %cst_16 {dimension_numbers = #tpu.dot_dimension_numbers<[1], [0], [0], [1], [0, 0, 1, 1], [], []>} : vector<32x32xf32>, vector<32x16xf32>, vector<32x16xf32> -> vector<32x16xf32>
    %19 = vector.extract_strided_slice %16 {offsets = [0, 0], sizes = [16, 16], strides = [1, 1]} : vector<32x16xf32> to vector<16x16xf32>
    %20 = vector.extract_strided_slice %18 {offsets = [16, 0], sizes = [16, 16], strides = [1, 1]} : vector<32x16xf32> to vector<16x16xf32>
    %21 = arith.subf %19, %20 : vector<16x16xf32>
    %22 = vector.extract_strided_slice %18 {offsets = [0, 0], sizes = [16, 16], strides = [1, 1]} : vector<32x16xf32> to vector<16x16xf32>
    %23 = vector.extract_strided_slice %16 {offsets = [16, 0], sizes = [16, 16], strides = [1, 1]} : vector<32x16xf32> to vector<16x16xf32>
    %24 = arith.addf %22, %23 : vector<16x16xf32>
    %25 = arith.mulf %21, %21 : vector<16x16xf32>
    %26 = arith.mulf %24, %24 : vector<16x16xf32>
    %27 = arith.addf %25, %26 : vector<16x16xf32>
    %cst_17 = arith.constant 2.49570121E-6 : f32
    %28 = vector.broadcast %cst_17 : f32 to vector<16x16xf32>
    %29 = arith.mulf %27, %28 : vector<16x16xf32>
    %c0_18 = arith.constant 0 : index
    %c0_19 = arith.constant 0 : index
    %30 = vector.load %arg7[%c0_18, %c0_19] : memref<16x16xf32, #tpu.memory_space<vmem>>, vector<16x16xf32>
    tpu.vector_store %arg7[%c0_18, %c0_19], %29 {strides = array<i32>} : memref<16x16xf32, #tpu.memory_space<vmem>>, vector<16x16xf32>,
    return
  }
}

module attributes {stable_mosaic.version = 11 : i64} {
  func.func @conv_noise_kernel(%arg0: memref<96x512xf32, #tpu.memory_space<vmem>>, %arg1: memref<512x16xf32, #tpu.memory_space<vmem>>, %arg2: memref<96x16xf32, #tpu.memory_space<vmem>>, %arg3: memref<96x16xf32, #tpu.memory_space<vmem>>) attributes {dimension_semantics = [], scalar_prefetch = 0 : i64, scratch_operands = 0 : i64, tpu.core_type = #tpu.core_type<tc>} {
    %c0 = arith.constant 0 : index
    %c0_0 = arith.constant 0 : index
    %0 = vector.load %arg0[%c0, %c0_0] : memref<96x512xf32, #tpu.memory_space<vmem>>, vector<96x512xf32>
    %c0_1 = arith.constant 0 : index
    %c0_2 = arith.constant 0 : index
    %1 = vector.load %arg1[%c0_1, %c0_2] : memref<512x16xf32, #tpu.memory_space<vmem>>, vector<512x16xf32>
    %cst = arith.constant dense<0.000000e+00> : vector<96x16xf32>
    %2 = tpu.matmul %0, %1, %cst {dimension_numbers = #tpu.dot_dimension_numbers<[1], [0], [0], [1], [0, 0, 1, 1], [], []>} : vector<96x512xf32>, vector<512x16xf32>, vector<96x16xf32> -> vector<96x16xf32>
    %cst_3 = arith.constant 0.000000e+00 : f32
    %3 = vector.broadcast %cst_3 : f32 to vector<96x16xf32>
    %4 = arith.maximumf %2, %3 : vector<96x16xf32>
    %cst_4 = arith.constant 4.000000e-04 : f32
    %5 = vector.broadcast %cst_4 : f32 to vector<96x16xf32>
    %6 = arith.mulf %5, %4 : vector<96x16xf32>
    %cst_5 = arith.constant 1.600000e-05 : f32
    %7 = vector.broadcast %cst_5 : f32 to vector<96x16xf32>
    %8 = arith.addf %7, %6 : vector<96x16xf32>
    %9 = math.sqrt %8 : vector<96x16xf32>
    %c0_6 = arith.constant 0 : index
    %c0_7 = arith.constant 0 : index
    %10 = vector.load %arg2[%c0_6, %c0_7] : memref<96x16xf32, #tpu.memory_space<vmem>>, vector<96x16xf32>
    %11 = arith.mulf %9, %10 : vector<96x16xf32>
    %12 = arith.addf %2, %11 : vector<96x16xf32>
    %c0_8 = arith.constant 0 : index
    %c0_9 = arith.constant 0 : index
    %13 = vector.load %arg3[%c0_8, %c0_9] : memref<96x16xf32, #tpu.memory_space<vmem>>, vector<96x16xf32>
    tpu.vector_store %arg3[%c0_8, %c0_9], %12 {strides = array<i32>} : memref<96x16xf32, #tpu.memory_space<vmem>>, vector<96x16xf32>,
    return
  }
}

</mosaic_0001>

<llo_original>
// kernel: _forward_pipeline.2
$region0: #{_forward_pipeline.2}
  #allocation0 [shape = 'u32[]', space=smem, size = 0x4, offset = 0x4, fixed_abs, tag = 'smem constant byte address 0x4 - core index']
  #allocation1 [shape = 'u32[72,128]{1,0:T(1,128)}', space=vmem, size = 0x9000, scoped, tag = 'internal scratch']
  %s0 = inlined_call_operand.vmem [shape: f32[32,32], index: 0, kind: input, shape index: {}]
  %s1 = inlined_call_operand.vmem [shape: f32[32,32], index: 1, kind: input, shape index: {}]
  %s2 = inlined_call_operand.vmem [shape: f32[32,32], index: 2, kind: input, shape index: {}]
  %s3 = inlined_call_operand.vmem [shape: f32[32,32], index: 3, kind: input, shape index: {}]
  %s4 = inlined_call_operand.vmem [shape: f32[32,32], index: 4, kind: input, shape index: {}]
  %s5 = inlined_call_operand.vmem [shape: f32[32,16], index: 5, kind: input, shape index: {}]
  %s6 = inlined_call_operand.vmem [shape: f32[32,16], index: 6, kind: input, shape index: {}]
  %s7 = inlined_call_operand.vmem [shape: f32[16,16], index: 7, kind: output, shape index: {}]
  %s8 = sld [smem:[#allocation0]]
  $region38: #{_forward_pipeline.2} parent=0
    _
  %s10 = ssub.s32 1, %s8
  %s11 = scalar_select 0, %s10, %s8
  // Predicated region
  $region2: #{_forward_pipeline.2} parent=0 // pred_check
    _
  $region3: #{_forward_pipeline.2} parent=0 // pred_check_branch
    %13 = sbr.rel (0) target = $region5
  $region4: #{_forward_pipeline.2} parent=0 // pred_region
    _
  $region5: #{_forward_pipeline.2} parent=0 // pred_fallthru
    _
  // Predicated region
  $region6: #{_forward_pipeline.2} parent=0 // pred_check
    _
  $region7: #{_forward_pipeline.2} parent=0 // pred_check_branch
    %15 = sbr.rel (0) target = $region9
  $region8: #{_forward_pipeline.2} parent=0 // pred_region
    _
  $region9: #{_forward_pipeline.2} parent=0 // pred_fallthru
    _
  // Predicated region
  $region10: #{_forward_pipeline.2} parent=0 // pred_check
    _
  $region11: #{_forward_pipeline.2} parent=0 // pred_check_branch
    %17 = sbr.rel (0) target = $region13
  $region12: #{_forward_pipeline.2} parent=0 // pred_region
    _
  $region13: #{_forward_pipeline.2} parent=0 // pred_fallthru
    _
  // Predicated region
  $region14: #{_forward_pipeline.2} parent=0 // pred_check
    _
  $region15: #{_forward_pipeline.2} parent=0 // pred_check_branch
    %19 = sbr.rel (0) target = $region17
  $region16: #{_forward_pipeline.2} parent=0 // pred_region
    _
  $region17: #{_forward_pipeline.2} parent=0 // pred_fallthru
    _
  // Predicated region
  $region18: #{_forward_pipeline.2} parent=0 // pred_check
    _
  $region19: #{_forward_pipeline.2} parent=0 // pred_check_branch
    %21 = sbr.rel (0) target = $region21
  $region20: #{_forward_pipeline.2} parent=0 // pred_region
    _
  $region21: #{_forward_pipeline.2} parent=0 // pred_fallthru
    _
  // Predicated region
  $region22: #{_forward_pipeline.2} parent=0 // pred_check
    _
  $region23: #{_forward_pipeline.2} parent=0 // pred_check_branch
    %23 = sbr.rel (0) target = $region25
  $region24: #{_forward_pipeline.2} parent=0 // pred_region
    _
  $region25: #{_forward_pipeline.2} parent=0 // pred_fallthru
    _
  // Predicated region
  $region26: #{_forward_pipeline.2} parent=0 // pred_check
    _
  $region27: #{_forward_pipeline.2} parent=0 // pred_check_branch
    %25 = sbr.rel (0) target = $region29
  $region28: #{_forward_pipeline.2} parent=0 // pred_region
    _
  $region29: #{_forward_pipeline.2} parent=0 // pred_fallthru
    _
  %v26 = vld [vmem:[%s0] sm:$0xff]
  %v27 = vld [vmem:[%s0 + $0x8] sm:$0xff]
  %v28 = vld [vmem:[%s0 + $0x10] sm:$0xff]
  %v29 = vld [vmem:[%s0 + $0x18] sm:$0xff]
  %v30 = vmul.f32 %v26, 4963021.5
  %v31 = vmul.f32 %v27, 4963021.5
  %v32 = vmul.f32 %v28, 4963021.5
  %v33 = vmul.f32 %v29, 4963021.5
  %v34 = vld [vmem:[%s1] sm:$0xff]
  %v35 = vld [vmem:[%s1 + $0x8] sm:$0xff]
  %v36 = vld [vmem:[%s1 + $0x10] sm:$0xff]
  %v37 = vld [vmem:[%s1 + $0x18] sm:$0xff]
  %v38 = vadd.f32 %v30, %v34
  %v39 = vadd.f32 %v31, %v35
  %v40 = vadd.f32 %v32, %v36
  %v41 = vadd.f32 %v33, %v37
  %v42 = vld [vmem:[%s2] sm:$0xff]
  %v43 = vld [vmem:[%s2 + $0x8] sm:$0xff]
  %v44 = vld [vmem:[%s2 + $0x10] sm:$0xff]
  %v45 = vld [vmem:[%s2 + $0x18] sm:$0xff]
  %v46 = vand.u32 2147483647, %v38
  %vm47 = vcmp.le.f32.partialorder %v46, 0.7853982
  %vm48 = vcmp.lt.s32.totalorder %v38, 0
  %v49 = vand.u32 %v38, 2139095040
  %v50 = vshrl.u32 %v49, 23
  %v51 = vsub.s32 %v50, 127
  %v52 = vand.u32 2147483647, %v38
  %v53 = vand.u32 %v52, 8388607
  %v54 = vor.u32 %v53, 8388608
  %v55 = vsub.s32 0, %v54
  %v56 = vadd.s32 %v51, 1
  %vm57 = vcmp.gt.s32.totalorder %v56, 0
  %v58 = vsel %vm57, %v56, 0
  %v59 = vshrl.u32 %v58, 5
  %v60 = vand.u32 %v58, 31
  %v61 = vsub.s32 32, %v60
  %v62 = vshrl.u32 683565275, %v61
  %v63 = vshll.u32 683565275, %v60
  %v64 = vshrl.u32 2475754826, %v61
  %v65 = vor.u32 %v63, %v64
  %v66 = vshll.u32 2475754826, %v60
  %v67 = vshrl.u32 2131351028, %v61
  %v68 = vor.u32 %v66, %v67
  %v69 = vshll.u32 2131351028, %v60
  %v70 = vshrl.u32 2102212464, %v61
  %v71 = vor.u32 %v69, %v70
  %v72 = vshll.u32 2102212464, %v60
  %v73 = vshrl.u32 920167782, %v61
  %v74 = vor.u32 %v72, %v73
  %v75 = vshll.u32 920167782, %v60
  %v76 = vshrl.u32 1326507024, %v61
  %v77 = vor.u32 %v75, %v76
  %vm78 = vcmp.lt.s32.totalorder %v59, 1
  %vm79 = vcmp.lt.s32.totalorder %v59, 2
  %vm80 = vcmp.lt.s32.totalorder %v59, 3
  %vm81 = vcmp.lt.s32.totalorder %v59, 4
  %v82 = vsel %vm78, %v62, %v65
  %v83 = vsel %vm81, %v71, 2102212464
  %v84 = vsel %vm80, %v68, %v83
  %v85 = vsel %vm79, %v82, %v84
  %v86 = vsel %vm78, %v65, %v68
  %v87 = vsel %vm81, %v74, 920167782
  %v88 = vsel %vm80, %v71, %v87
  %v89 = vsel %vm79, %v86, %v88
  %v90 = vsel %vm78, %v68, %v71
  %v91 = vsel %vm81, %v77, 1326507024
  %v92 = vsel %vm80, %v74, %v91
  %v93 = vsel %vm79, %v90, %v92
  %v94 = vshll.u32 %v54, 8
  %v95 = vand.u32 %v94, 65535
  %v96 = vshrl.u32 %v94, 16
  %v97 = vand.u32 %v93, 65535
  %v98 = vshrl.u32 %v93, 16
  %v99 = vmul.u32 %v95, %v97
  %v100 = vmul.u32 %v95, %v98
  %v101 = vmul.u32 %v96, %v97
  %v102 = vmul.u32 %v96, %v98
  %v103 = vshll.u32 %v100, 16
  %v104 = vshrl.u32 %v100, 16
  %v105 = vshll.u32 %v101, 16
  %v106 = vshrl.u32 %v101, 16
  %vm107 = vc.u32 %v99, %v103
  %v108 = vsel %vm107, 1, 0
  %v109 = vadd.s32 %v99, %v103
  %v110 = vadd.s32 %v102, %v108
  %vm111 = vc.u32 %v109, %v105
  %v112 = vsel %vm111, 1, 0
  %v113 = vadd.s32 %v109, %v105
  %v114 = vadd.s32 %v110, %v112
  %v115 = vadd.s32 %v114, %v104
  %v116 = vadd.s32 %v115, %v106
  %v117 = vand.u32 %v94, 65535
  %v118 = vshrl.u32 %v94, 16
  %v119 = vand.u32 %v89, 65535
  %v120 = vshrl.u32 %v89, 16
  %v121 = vmul.u32 %v117, %v119
  %v122 = vmul.u32 %v117, %v120
  %v123 = vmul.u32 %v118, %v119
  %v124 = vmul.u32 %v118, %v120
  %v125 = vshll.u32 %v122, 16
  %v126 = vshrl.u32 %v122, 16
  %v127 = vshll.u32 %v123, 16
  %v128 = vshrl.u32 %v123, 16
  %vm129 = vc.u32 %v121, %v125
  %v130 = vsel %vm129, 1, 0
  %v131 = vadd.s32 %v121, %v125
  %v132 = vadd.s32 %v124, %v130
  %vm133 = vc.u32 %v131, %v127
  %v134 = vsel %vm133, 1, 0
  %v135 = vadd.s32 %v131, %v127
  %v136 = vadd.s32 %v132, %v134
  %v137 = vadd.s32 %v136, %v126
  %v138 = vadd.s32 %v137, %v128
  %v139 = vmul.u32 %v94, %v85
  %v140 = vadd.s32 %v116, %v135
  %vm141 = vc.u32 %v116, %v135
  %v142 = vadd.s32 %v138, 1
  %v143 = vsel %vm141, %v142, %v138
  %v144 = vadd.s32 %v139, %v143
  %v145 = vadd.s32 %v144, 536870912
  %v146 = vshrl.u32 %v145, 30
  %v147 = vshll.u32 %v146, 30
  %v148 = vsub.s32 %v144, %v147
  %vm149 = vcmp.lt.s32.totalorder %v148, 0
  %v150 = vsub.s32 0, %v148
  %v151 = vsel %vm149, %v150, %v148
  %v152 = vclz %v151
  %v153 = vsub.s32 %v152, 2
  %vm154 = vcmp.gt.s32.totalorder 0, %v153
  %v155 = vsel %vm154, 0, %v153
  %v156 = vsub.s32 32, %v155
  %v157 = vshll.u32 %v148, %v155
  %v158 = vshrl.u32 %v140, %v156
  %v159 = vor.u32 %v157, %v158
  %v160 = vsub.s32 4294967266, %v155
  %v161 = vadd.s32 %v160, 127
  %v162 = vshll.u32 %v161, 23
  %v163 = vor.u32 4788187, %v162
  %v164 = vand.u32 2147483647, %v163
  %v166 = vcvt.s32.f32 %v159
  %v167 = vmul.f32 %v166, %v164
  %v168 = vxor.u32 %v167, 2147483648
  %v169 = vsel %vm48, %v168, %v167
  %v170 = vsub.s32 4, %v146
  %v171 = vsel %vm48, %v170, %v146
  %v172 = vsel %vm47, %v38, %v169
  %v173 = vsel %vm47, 0, %v171
  %v174 = vmul.f32 %v172, %v172
  %v175 = vmul.f32 %v174, -0.001358992
  %v176 = vadd.f32 %v175, 0.041655596
  %v177 = vmul.f32 %v174, %v176
  %v178 = vadd.f32 %v177, -0.4999988
  %v179 = vmul.f32 %v174, %v178
  %v180 = vadd.f32 1.0, %v179
  %v181 = vmul.f32 %v172, %v172
  %v182 = vmul.f32 %v181, -0.00019511016
  %v183 = vadd.f32 %v182, 0.008332121
  %v184 = vmul.f32 %v181, %v183
  %v185 = vadd.f32 %v184, -0.16666654
  %v186 = vmul.f32 %v181, %v185
  %v187 = vadd.f32 %v186, 1.0
  %v188 = vmul.f32 %v187, %v172
  %vm189 = vweird.f32 %v38
  %v190 = vand.u32 %v173, 3
  %vm191 = vcmp.lt.s32.totalorder %v190, 2
  %vm192 = vcmp.eq.s32.totalorder %v190, 0
  %v193 = vxor.u32 %v188, 2147483648
  %v194 = vsel %vm192, %v180, %v193
  %vm195 = vcmp.eq.s32.totalorder %v190, 2
  %v196 = vxor.u32 %v180, 2147483648
  %v197 = vsel %vm195, %v196, %v188
  %v198 = vsel %vm191, %v194, %v197
  %v199 = vsel %vm189, nan, %v198
  %v200 = vand.u32 2147483647, %v39
  %vm201 = vcmp.le.f32.partialorder %v200, 0.7853982
  %vm202 = vcmp.lt.s32.totalorder %v39, 0
  %v203 = vand.u32 %v39, 2139095040
  %v204 = vshrl.u32 %v203, 23
  %v205 = vsub.s32 %v204, 127
  %v206 = vand.u32 2147483647, %v39
  %v207 = vand.u32 %v206, 8388607
  %v208 = vor.u32 %v207, 8388608
  %v209 = vsub.s32 0, %v208
  %v210 = vadd.s32 %v205, 1
  %vm211 = vcmp.gt.s32.totalorder %v210, 0
  %v212 = vsel %vm211, %v210, 0
  %v213 = vshrl.u32 %v212, 5
  %v214 = vand.u32 %v212, 31
  %v215 = vsub.s32 32, %v214
  %v216 = vshrl.u32 683565275, %v215
  %v217 = vshll.u32 683565275, %v214
  %v218 = vshrl.u32 2475754826, %v215
  %v219 = vor.u32 %v217, %v218
  %v220 = vshll.u32 2475754826, %v214
  %v221 = vshrl.u32 2131351028, %v215
  %v222 = vor.u32 %v220, %v221
  %v223 = vshll.u32 2131351028, %v214
  %v224 = vshrl.u32 2102212464, %v215
  %v225 = vor.u32 %v223, %v224
  %v226 = vshll.u32 2102212464, %v214
  %v227 = vshrl.u32 920167782, %v215
  %v228 = vor.u32 %v226, %v227
  %v229 = vshll.u32 920167782, %v214
  %v230 = vshrl.u32 1326507024, %v215
  %v231 = vor.u32 %v229, %v230
  %vm232 = vcmp.lt.s32.totalorder %v213, 1
  %vm233 = vcmp.lt.s32.totalorder %v213, 2
  %vm234 = vcmp.lt.s32.totalorder %v213, 3
  %vm235 = vcmp.lt.s32.totalorder %v213, 4
  %v236 = vsel %vm232, %v216, %v219
  %v237 = vsel %vm235, %v225, 2102212464
  %v238 = vsel %vm234, %v222, %v237
  %v239 = vsel %vm233, %v236, %v238
  %v240 = vsel %vm232, %v219, %v222
  %v241 = vsel %vm235, %v228, 920167782
  %v242 = vsel %vm234, %v225, %v241
  %v243 = vsel %vm233, %v240, %v242
  %v244 = vsel %vm232, %v222, %v225
  %v245 = vsel %vm235, %v231, 1326507024
  %v246 = vsel %vm234, %v228, %v245
  %v247 = vsel %vm233, %v244, %v246
  %v248 = vshll.u32 %v208, 8
  %v249 = vand.u32 %v248, 65535
  %v250 = vshrl.u32 %v248, 16
  %v251 = vand.u32 %v247, 65535
  %v252 = vshrl.u32 %v247, 16
  %v253 = vmul.u32 %v249, %v251
  %v254 = vmul.u32 %v249, %v252
  %v255 = vmul.u32 %v250, %v251
  %v256 = vmul.u32 %v250, %v252
  %v257 = vshll.u32 %v254, 16
  %v258 = vshrl.u32 %v254, 16
  %v259 = vshll.u32 %v255, 16
  %v260 = vshrl.u32 %v255, 16
  %vm261 = vc.u32 %v253, %v257
  %v262 = vsel %vm261, 1, 0
  %v263 = vadd.s32 %v253, %v257
  %v264 = vadd.s32 %v256, %v262
  %vm265 = vc.u32 %v263, %v259
  %v266 = vsel %vm265, 1, 0
  %v267 = vadd.s32 %v263, %v259
  %v268 = vadd.s32 %v264, %v266
  %v269 = vadd.s32 %v268, %v258
  %v270 = vadd.s32 %v269, %v260
  %v271 = vand.u32 %v248, 65535
  %v272 = vshrl.u32 %v248, 16
  %v273 = vand.u32 %v243, 65535
  %v274 = vshrl.u32 %v243, 16
  %v275 = vmul.u32 %v271, %v273
  %v276 = vmul.u32 %v271, %v274
  %v277 = vmul.u32 %v272, %v273
  %v278 = vmul.u32 %v272, %v274
  %v279 = vshll.u32 %v276, 16
  %v280 = vshrl.u32 %v276, 16
  %v281 = vshll.u32 %v277, 16
  %v282 = vshrl.u32 %v277, 16
  %vm283 = vc.u32 %v275, %v279
  %v284 = vsel %vm283, 1, 0
  %v285 = vadd.s32 %v275, %v279
  %v286 = vadd.s32 %v278, %v284
  %vm287 = vc.u32 %v285, %v281
  %v288 = vsel %vm287, 1, 0
  %v289 = vadd.s32 %v285, %v281
  %v290 = vadd.s32 %v286, %v288
  %v291 = vadd.s32 %v290, %v280
  %v292 = vadd.s32 %v291, %v282
  %v293 = vmul.u32 %v248, %v239
  %v294 = vadd.s32 %v270, %v289
  %vm295 = vc.u32 %v270, %v289
  %v296 = vadd.s32 %v292, 1
  %v297 = vsel %vm295, %v296, %v292
  %v298 = vadd.s32 %v293, %v297
  %v299 = vadd.s32 %v298, 536870912
  %v300 = vshrl.u32 %v299, 30
  %v301 = vshll.u32 %v300, 30
  %v302 = vsub.s32 %v298, %v301
  %vm303 = vcmp.lt.s32.totalorder %v302, 0
  %v304 = vsub.s32 0, %v302
  %v305 = vsel %vm303, %v304, %v302
  %v306 = vclz %v305
  %v307 = vsub.s32 %v306, 2
  %vm308 = vcmp.gt.s32.totalorder 0, %v307
  %v309 = vsel %vm308, 0, %v307
  %v310 = vsub.s32 32, %v309
  %v311 = vshll.u32 %v302, %v309
  %v312 = vshrl.u32 %v294, %v310
  %v313 = vor.u32 %v311, %v312
  %v314 = vsub.s32 4294967266, %v309
  %v315 = vadd.s32 %v314, 127
  %v316 = vshll.u32 %v315, 23
  %v317 = vor.u32 4788187, %v316
  %v318 = vand.u32 2147483647, %v317
  %v320 = vcvt.s32.f32 %v313
  %v321 = vmul.f32 %v320, %v318
  %v322 = vxor.u32 %v321, 2147483648
  %v323 = vsel %vm202, %v322, %v321
  %v324 = vsub.s32 4, %v300
  %v325 = vsel %vm202, %v324, %v300
  %v326 = vsel %vm201, %v39, %v323
  %v327 = vsel %vm201, 0, %v325
  %v328 = vmul.f32 %v326, %v326
  %v329 = vmul.f32 %v328, -0.001358992
  %v330 = vadd.f32 %v329, 0.041655596
  %v331 = vmul.f32 %v328, %v330
  %v332 = vadd.f32 %v331, -0.4999988
  %v333 = vmul.f32 %v328, %v332
  %v334 = vadd.f32 1.0, %v333
  %v335 = vmul.f32 %v326, %v326
  %v336 = vmul.f32 %v335, -0.00019511016
  %v337 = vadd.f32 %v336, 0.008332121
  %v338 = vmul.f32 %v335, %v337
  %v339 = vadd.f32 %v338, -0.16666654
  %v340 = vmul.f32 %v335, %v339
  %v341 = vadd.f32 %v340, 1.0
  %v342 = vmul.f32 %v341, %v326
  %vm343 = vweird.f32 %v39
  %v344 = vand.u32 %v327, 3
  %vm345 = vcmp.lt.s32.totalorder %v344, 2
  %vm346 = vcmp.eq.s32.totalorder %v344, 0
  %v347 = vxor.u32 %v342, 2147483648
  %v348 = vsel %vm346, %v334, %v347
  %vm349 = vcmp.eq.s32.totalorder %v344, 2
  %v350 = vxor.u32 %v334, 2147483648
  %v351 = vsel %vm349, %v350, %v342
  %v352 = vsel %vm345, %v348, %v351
  %v353 = vsel %vm343, nan, %v352
  %v354 = vand.u32 2147483647, %v40
  %vm355 = vcmp.le.f32.partialorder %v354, 0.7853982
  %vm356 = vcmp.lt.s32.totalorder %v40, 0
  %v357 = vand.u32 %v40, 2139095040
  %v358 = vshrl.u32 %v357, 23
  %v359 = vsub.s32 %v358, 127
  %v360 = vand.u32 2147483647, %v40
  %v361 = vand.u32 %v360, 8388607
  %v362 = vor.u32 %v361, 8388608
  %v363 = vsub.s32 0, %v362
  %v364 = vadd.s32 %v359, 1
  %vm365 = vcmp.gt.s32.totalorder %v364, 0
  %v366 = vsel %vm365, %v364, 0
  %v367 = vshrl.u32 %v366, 5
  %v368 = vand.u32 %v366, 31
  %v369 = vsub.s32 32, %v368
  %v370 = vshrl.u32 683565275, %v369
  %v371 = vshll.u32 683565275, %v368
  %v372 = vshrl.u32 2475754826, %v369
  %v373 = vor.u32 %v371, %v372
  %v374 = vshll.u32 2475754826, %v368
  %v375 = vshrl.u32 2131351028, %v369
  %v376 = vor.u32 %v374, %v375
  %v377 = vshll.u32 2131351028, %v368
  %v378 = vshrl.u32 2102212464, %v369
  %v379 = vor.u32 %v377, %v378
  %v380 = vshll.u32 2102212464, %v368
  %v381 = vshrl.u32 920167782, %v369
  %v382 = vor.u32 %v380, %v381
  %v383 = vshll.u32 920167782, %v368
  %v384 = vshrl.u32 1326507024, %v369
  %v385 = vor.u32 %v383, %v384
  %vm386 = vcmp.lt.s32.totalorder %v367, 1
  %vm387 = vcmp.lt.s32.totalorder %v367, 2
  %vm388 = vcmp.lt.s32.totalorder %v367, 3
  %vm389 = vcmp.lt.s32.totalorder %v367, 4
  %v390 = vsel %vm386, %v370, %v373
  %v391 = vsel %vm389, %v379, 2102212464
  %v392 = vsel %vm388, %v376, %v391
  %v393 = vsel %vm387, %v390, %v392
  %v394 = vsel %vm386, %v373, %v376
  %v395 = vsel %vm389, %v382, 920167782
  %v396 = vsel %vm388, %v379, %v395
  %v397 = vsel %vm387, %v394, %v396
  %v398 = vsel %vm386, %v376, %v379
  %v399 = vsel %vm389, %v385, 1326507024
  %v400 = vsel %vm388, %v382, %v399
  %v401 = vsel %vm387, %v398, %v400
  %v402 = vshll.u32 %v362, 8
  %v403 = vand.u32 %v402, 65535
  %v404 = vshrl.u32 %v402, 16
  %v405 = vand.u32 %v401, 65535
  %v406 = vshrl.u32 %v401, 16
  %v407 = vmul.u32 %v403, %v405
  %v408 = vmul.u32 %v403, %v406
  %v409 = vmul.u32 %v404, %v405
  %v410 = vmul.u32 %v404, %v406
  %v411 = vshll.u32 %v408, 16
  %v412 = vshrl.u32 %v408, 16
  %v413 = vshll.u32 %v409, 16
  %v414 = vshrl.u32 %v409, 16
  %vm415 = vc.u32 %v407, %v411
  %v416 = vsel %vm415, 1, 0
  %v417 = vadd.s32 %v407, %v411
  %v418 = vadd.s32 %v410, %v416
  %vm419 = vc.u32 %v417, %v413
  %v420 = vsel %vm419, 1, 0
  %v421 = vadd.s32 %v417, %v413
  %v422 = vadd.s32 %v418, %v420
  %v423 = vadd.s32 %v422, %v412
  %v424 = vadd.s32 %v423, %v414
  %v425 = vand.u32 %v402, 65535
  %v426 = vshrl.u32 %v402, 16
  %v427 = vand.u32 %v397, 65535
  %v428 = vshrl.u32 %v397, 16
  %v429 = vmul.u32 %v425, %v427
  %v430 = vmul.u32 %v425, %v428
  %v431 = vmul.u32 %v426, %v427
  %v432 = vmul.u32 %v426, %v428
  %v433 = vshll.u32 %v430, 16
  %v434 = vshrl.u32 %v430, 16
  %v435 = vshll.u32 %v431, 16
  %v436 = vshrl.u32 %v431, 16
  %vm437 = vc.u32 %v429, %v433
  %v438 = vsel %vm437, 1, 0
  %v439 = vadd.s32 %v429, %v433
  %v440 = vadd.s32 %v432, %v438
  %vm441 = vc.u32 %v439, %v435
  %v442 = vsel %vm441, 1, 0
  %v443 = vadd.s32 %v439, %v435
  %v444 = vadd.s32 %v440, %v442
  %v445 = vadd.s32 %v444, %v434
  %v446 = vadd.s32 %v445, %v436
  %v447 = vmul.u32 %v402, %v393
  %v448 = vadd.s32 %v424, %v443
  %vm449 = vc.u32 %v424, %v443
  %v450 = vadd.s32 %v446, 1
  %v451 = vsel %vm449, %v450, %v446
  %v452 = vadd.s32 %v447, %v451
  %v453 = vadd.s32 %v452, 536870912
  %v454 = vshrl.u32 %v453, 30
  %v455 = vshll.u32 %v454, 30
  %v456 = vsub.s32 %v452, %v455
  %vm457 = vcmp.lt.s32.totalorder %v456, 0
  %v458 = vsub.s32 0, %v456
  %v459 = vsel %vm457, %v458, %v456
  %v460 = vclz %v459
  %v461 = vsub.s32 %v460, 2
  %vm462 = vcmp.gt.s32.totalorder 0, %v461
  %v463 = vsel %vm462, 0, %v461
  %v464 = vsub.s32 32, %v463
  %v465 = vshll.u32 %v456, %v463
  %v466 = vshrl.u32 %v448, %v464
  %v467 = vor.u32 %v465, %v466
  %v468 = vsub.s32 4294967266, %v463
  %v469 = vadd.s32 %v468, 127
  %v470 = vshll.u32 %v469, 23
  %v471 = vor.u32 4788187, %v470
  %v472 = vand.u32 2147483647, %v471
  %v474 = vcvt.s32.f32 %v467
  %v475 = vmul.f32 %v474, %v472
  %v476 = vxor.u32 %v475, 2147483648
  %v477 = vsel %vm356, %v476, %v475
  %v478 = vsub.s32 4, %v454
  %v479 = vsel %vm356, %v478, %v454
  %v480 = vsel %vm355, %v40, %v477
  %v481 = vsel %vm355, 0, %v479
  %v482 = vmul.f32 %v480, %v480
  %v483 = vmul.f32 %v482, -0.001358992
  %v484 = vadd.f32 %v483, 0.041655596
  %v485 = vmul.f32 %v482, %v484
  %v486 = vadd.f32 %v485, -0.4999988
  %v487 = vmul.f32 %v482, %v486
  %v488 = vadd.f32 1.0, %v487
  %v489 = vmul.f32 %v480, %v480
  %v490 = vmul.f32 %v489, -0.00019511016
  %v491 = vadd.f32 %v490, 0.008332121
  %v492 = vmul.f32 %v489, %v491
  %v493 = vadd.f32 %v492, -0.16666654
  %v494 = vmul.f32 %v489, %v493
  %v495 = vadd.f32 %v494, 1.0
  %v496 = vmul.f32 %v495, %v480
  %vm497 = vweird.f32 %v40
  %v498 = vand.u32 %v481, 3
  %vm499 = vcmp.lt.s32.totalorder %v498, 2
  %vm500 = vcmp.eq.s32.totalorder %v498, 0
  %v501 = vxor.u32 %v496, 2147483648
  %v502 = vsel %vm500, %v488, %v501
  %vm503 = vcmp.eq.s32.totalorder %v498, 2
  %v504 = vxor.u32 %v488, 2147483648
  %v505 = vsel %vm503, %v504, %v496
  %v506 = vsel %vm499, %v502, %v505
  %v507 = vsel %vm497, nan, %v506
  %v508 = vand.u32 2147483647, %v41
  %vm509 = vcmp.le.f32.partialorder %v508, 0.7853982
  %vm510 = vcmp.lt.s32.totalorder %v41, 0
  %v511 = vand.u32 %v41, 2139095040
  %v512 = vshrl.u32 %v511, 23
  %v513 = vsub.s32 %v512, 127
  %v514 = vand.u32 2147483647, %v41
  %v515 = vand.u32 %v514, 8388607
  %v516 = vor.u32 %v515, 8388608
  %v517 = vsub.s32 0, %v516
  %v518 = vadd.s32 %v513, 1
  %vm519 = vcmp.gt.s32.totalorder %v518, 0
  %v520 = vsel %vm519, %v518, 0
  %v521 = vshrl.u32 %v520, 5
  %v522 = vand.u32 %v520, 31
  %v523 = vsub.s32 32, %v522
  %v524 = vshrl.u32 683565275, %v523
  %v525 = vshll.u32 683565275, %v522
  %v526 = vshrl.u32 2475754826, %v523
  %v527 = vor.u32 %v525, %v526
  %v528 = vshll.u32 2475754826, %v522
  %v529 = vshrl.u32 2131351028, %v523
  %v530 = vor.u32 %v528, %v529
  %v531 = vshll.u32 2131351028, %v522
  %v532 = vshrl.u32 2102212464, %v523
  %v533 = vor.u32 %v531, %v532
  %v534 = vshll.u32 2102212464, %v522
  %v535 = vshrl.u32 920167782, %v523
  %v536 = vor.u32 %v534, %v535
  %v537 = vshll.u32 920167782, %v522
  %v538 = vshrl.u32 1326507024, %v523
  %v539 = vor.u32 %v537, %v538
  %vm540 = vcmp.lt.s32.totalorder %v521, 1
  %vm541 = vcmp.lt.s32.totalorder %v521, 2
  %vm542 = vcmp.lt.s32.totalorder %v521, 3
  %vm543 = vcmp.lt.s32.totalorder %v521, 4
  %v544 = vsel %vm540, %v524, %v527
  %v545 = vsel %vm543, %v533, 2102212464
  %v546 = vsel %vm542, %v530, %v545
  %v547 = vsel %vm541, %v544, %v546
  %v548 = vsel %vm540, %v527, %v530
  %v549 = vsel %vm543, %v536, 920167782
  %v550 = vsel %vm542, %v533, %v549
  %v551 = vsel %vm541, %v548, %v550
  %v552 = vsel %vm540, %v530, %v533
  %v553 = vsel %vm543, %v539, 1326507024
  %v554 = vsel %vm542, %v536, %v553
  %v555 = vsel %vm541, %v552, %v554
  %v556 = vshll.u32 %v516, 8
  %v557 = vand.u32 %v556, 65535
  %v558 = vshrl.u32 %v556, 16
  %v559 = vand.u32 %v555, 65535
  %v560 = vshrl.u32 %v555, 16
  %v561 = vmul.u32 %v557, %v559
  %v562 = vmul.u32 %v557, %v560
  %v563 = vmul.u32 %v558, %v559
  %v564 = vmul.u32 %v558, %v560
  %v565 = vshll.u32 %v562, 16
  %v566 = vshrl.u32 %v562, 16
  %v567 = vshll.u32 %v563, 16
  %v568 = vshrl.u32 %v563, 16
  %vm569 = vc.u32 %v561, %v565
  %v570 = vsel %vm569, 1, 0
  %v571 = vadd.s32 %v561, %v565
  %v572 = vadd.s32 %v564, %v570
  %vm573 = vc.u32 %v571, %v567
  %v574 = vsel %vm573, 1, 0
  %v575 = vadd.s32 %v571, %v567
  %v576 = vadd.s32 %v572, %v574
  %v577 = vadd.s32 %v576, %v566
  %v578 = vadd.s32 %v577, %v568
  %v579 = vand.u32 %v556, 65535
  %v580 = vshrl.u32 %v556, 16
  %v581 = vand.u32 %v551, 65535
  %v582 = vshrl.u32 %v551, 16
  %v583 = vmul.u32 %v579, %v581
  %v584 = vmul.u32 %v579, %v582
  %v585 = vmul.u32 %v580, %v581
  %v586 = vmul.u32 %v580, %v582
  %v587 = vshll.u32 %v584, 16
  %v588 = vshrl.u32 %v584, 16
  %v589 = vshll.u32 %v585, 16
  %v590 = vshrl.u32 %v585, 16
  %vm591 = vc.u32 %v583, %v587
  %v592 = vsel %vm591, 1, 0
  %v593 = vadd.s32 %v583, %v587
  %v594 = vadd.s32 %v586, %v592
  %vm595 = vc.u32 %v593, %v589
  %v596 = vsel %vm595, 1, 0
  %v597 = vadd.s32 %v593, %v589
  %v598 = vadd.s32 %v594, %v596
  %v599 = vadd.s32 %v598, %v588
  %v600 = vadd.s32 %v599, %v590
  %v601 = vmul.u32 %v556, %v547
  %v602 = vadd.s32 %v578, %v597
  %vm603 = vc.u32 %v578, %v597
  %v604 = vadd.s32 %v600, 1
  %v605 = vsel %vm603, %v604, %v600
  %v606 = vadd.s32 %v601, %v605
  %v607 = vadd.s32 %v606, 536870912
  %v608 = vshrl.u32 %v607, 30
  %v609 = vshll.u32 %v608, 30
  %v610 = vsub.s32 %v606, %v609
  %vm611 = vcmp.lt.s32.totalorder %v610, 0
  %v612 = vsub.s32 0, %v610
  %v613 = vsel %vm611, %v612, %v610
  %v614 = vclz %v613
  %v615 = vsub.s32 %v614, 2
  %vm616 = vcmp.gt.s32.totalorder 0, %v615
  %v617 = vsel %vm616, 0, %v615
  %v618 = vsub.s32 32, %v617
  %v619 = vshll.u32 %v610, %v617
  %v620 = vshrl.u32 %v602, %v618
  %v621 = vor.u32 %v619, %v620
  %v622 = vsub.s32 4294967266, %v617
  %v623 = vadd.s32 %v622, 127
  %v624 = vshll.u32 %v623, 23
  %v625 = vor.u32 4788187, %v624
  %v626 = vand.u32 2147483647, %v625
  %v628 = vcvt.s32.f32 %v621
  %v629 = vmul.f32 %v628, %v626
  %v630 = vxor.u32 %v629, 2147483648
  %v631 = vsel %vm510, %v630, %v629
  %v632 = vsub.s32 4, %v608
  %v633 = vsel %vm510, %v632, %v608
  %v634 = vsel %vm509, %v41, %v631
  %v635 = vsel %vm509, 0, %v633
  %v636 = vmul.f32 %v634, %v634
  %v637 = vmul.f32 %v636, -0.001358992
  %v638 = vadd.f32 %v637, 0.041655596
  %v639 = vmul.f32 %v636, %v638
  %v640 = vadd.f32 %v639, -0.4999988
  %v641 = vmul.f32 %v636, %v640
  %v642 = vadd.f32 1.0, %v641
  %v643 = vmul.f32 %v634, %v634
  %v644 = vmul.f32 %v643, -0.00019511016
  %v645 = vadd.f32 %v644, 0.008332121
  %v646 = vmul.f32 %v643, %v645
  %v647 = vadd.f32 %v646, -0.16666654
  %v648 = vmul.f32 %v643, %v647
  %v649 = vadd.f32 %v648, 1.0
  %v650 = vmul.f32 %v649, %v634
  %vm651 = vweird.f32 %v41
  %v652 = vand.u32 %v635, 3
  %vm653 = vcmp.lt.s32.totalorder %v652, 2
  %vm654 = vcmp.eq.s32.totalorder %v652, 0
  %v655 = vxor.u32 %v650, 2147483648
  %v656 = vsel %vm654, %v642, %v655
  %vm657 = vcmp.eq.s32.totalorder %v652, 2
  %v658 = vxor.u32 %v642, 2147483648
  %v659 = vsel %vm657, %v658, %v650
  %v660 = vsel %vm653, %v656, %v659
  %v661 = vsel %vm651, nan, %v660
  %v662 = vmul.f32 %v42, %v199
  %v663 = vmul.f32 %v43, %v353
  %v664 = vmul.f32 %v44, %v507
  %v665 = vmul.f32 %v45, %v661
  %v666 = vand.u32 2147483647, %v38
  %vm667 = vcmp.le.f32.partialorder %v666, 0.7853982
  %vm668 = vcmp.lt.s32.totalorder %v38, 0
  %v669 = vand.u32 %v38, 2139095040
  %v670 = vshrl.u32 %v669, 23
  %v671 = vsub.s32 %v670, 127
  %v672 = vand.u32 2147483647, %v38
  %v673 = vand.u32 %v672, 8388607
  %v674 = vor.u32 %v673, 8388608
  %v675 = vsub.s32 0, %v674
  %v676 = vadd.s32 %v671, 1
  %vm677 = vcmp.gt.s32.totalorder %v676, 0
  %v678 = vsel %vm677, %v676, 0
  %v679 = vshrl.u32 %v678, 5
  %v680 = vand.u32 %v678, 31
  %v681 = vsub.s32 32, %v680
  %v682 = vshrl.u32 683565275, %v681
  %v683 = vshll.u32 683565275, %v680
  %v684 = vshrl.u32 2475754826, %v681
  %v685 = vor.u32 %v683, %v684
  %v686 = vshll.u32 2475754826, %v680
  %v687 = vshrl.u32 2131351028, %v681
  %v688 = vor.u32 %v686, %v687
  %v689 = vshll.u32 2131351028, %v680
  %v690 = vshrl.u32 2102212464, %v681
  %v691 = vor.u32 %v689, %v690
  %v692 = vshll.u32 2102212464, %v680
  %v693 = vshrl.u32 920167782, %v681
  %v694 = vor.u32 %v692, %v693
  %v695 = vshll.u32 920167782, %v680
  %v696 = vshrl.u32 1326507024, %v681
  %v697 = vor.u32 %v695, %v696
  %vm698 = vcmp.lt.s32.totalorder %v679, 1
  %vm699 = vcmp.lt.s32.totalorder %v679, 2
  %vm700 = vcmp.lt.s32.totalorder %v679, 3
  %vm701 = vcmp.lt.s32.totalorder %v679, 4
  %v702 = vsel %vm698, %v682, %v685
  %v703 = vsel %vm701, %v691, 2102212464
  %v704 = vsel %vm700, %v688, %v703
  %v705 = vsel %vm699, %v702, %v704
  %v706 = vsel %vm698, %v685, %v688
  %v707 = vsel %vm701, %v694, 920167782
  %v708 = vsel %vm700, %v691, %v707
  %v709 = vsel %vm699, %v706, %v708
  %v710 = vsel %vm698, %v688, %v691
  %v711 = vsel %vm701, %v697, 1326507024
  %v712 = vsel %vm700, %v694, %v711
  %v713 = vsel %vm699, %v710, %v712
  %v714 = vshll.u32 %v674, 8
  %v715 = vand.u32 %v714, 65535
  %v716 = vshrl.u32 %v714, 16
  %v717 = vand.u32 %v713, 65535
  %v718 = vshrl.u32 %v713, 16
  %v719 = vmul.u32 %v715, %v717
  %v720 = vmul.u32 %v715, %v718
  %v721 = vmul.u32 %v716, %v717
  %v722 = vmul.u32 %v716, %v718
  %v723 = vshll.u32 %v720, 16
  %v724 = vshrl.u32 %v720, 16
  %v725 = vshll.u32 %v721, 16
  %v726 = vshrl.u32 %v721, 16
  %vm727 = vc.u32 %v719, %v723
  %v728 = vsel %vm727, 1, 0
  %v729 = vadd.s32 %v719, %v723
  %v730 = vadd.s32 %v722, %v728
  %vm731 = vc.u32 %v729, %v725
  %v732 = vsel %vm731, 1, 0
  %v733 = vadd.s32 %v729, %v725
  %v734 = vadd.s32 %v730, %v732
  %v735 = vadd.s32 %v734, %v724
  %v736 = vadd.s32 %v735, %v726
  %v737 = vand.u32 %v714, 65535
  %v738 = vshrl.u32 %v714, 16
  %v739 = vand.u32 %v709, 65535
  %v740 = vshrl.u32 %v709, 16
  %v741 = vmul.u32 %v737, %v739
  %v742 = vmul.u32 %v737, %v740
  %v743 = vmul.u32 %v738, %v739
  %v744 = vmul.u32 %v738, %v740
  %v745 = vshll.u32 %v742, 16
  %v746 = vshrl.u32 %v742, 16
  %v747 = vshll.u32 %v743, 16
  %v748 = vshrl.u32 %v743, 16
  %vm749 = vc.u32 %v741, %v745
  %v750 = vsel %vm749, 1, 0
  %v751 = vadd.s32 %v741, %v745
  %v752 = vadd.s32 %v744, %v750
  %vm753 = vc.u32 %v751, %v747
  %v754 = vsel %vm753, 1, 0
  %v755 = vadd.s32 %v751, %v747
  %v756 = vadd.s32 %v752, %v754
  %v757 = vadd.s32 %v756, %v746
  %v758 = vadd.s32 %v757, %v748
  %v759 = vmul.u32 %v714, %v705
  %v760 = vadd.s32 %v736, %v755
  %vm761 = vc.u32 %v736, %v755
  %v762 = vadd.s32 %v758, 1
  %v763 = vsel %vm761, %v762, %v758
  %v764 = vadd.s32 %v759, %v763
  %v765 = vadd.s32 %v764, 536870912
  %v766 = vshrl.u32 %v765, 30
  %v767 = vshll.u32 %v766, 30
  %v768 = vsub.s32 %v764, %v767
  %vm769 = vcmp.lt.s32.totalorder %v768, 0
  %v770 = vsub.s32 0, %v768
  %v771 = vsel %vm769, %v770, %v768
  %v772 = vclz %v771
  %v773 = vsub.s32 %v772, 2
  %vm774 = vcmp.gt.s32.totalorder 0, %v773
  %v775 = vsel %vm774, 0, %v773
  %v776 = vsub.s32 32, %v775
  %v777 = vshll.u32 %v768, %v775
  %v778 = vshrl.u32 %v760, %v776
  %v779 = vor.u32 %v777, %v778
  %v780 = vsub.s32 4294967266, %v775
  %v781 = vadd.s32 %v780, 127
  %v782 = vshll.u32 %v781, 23
  %v783 = vor.u32 4788187, %v782
  %v784 = vand.u32 2147483647, %v783
  %v786 = vcvt.s32.f32 %v779
  %v787 = vmul.f32 %v786, %v784
  %v788 = vxor.u32 %v787, 2147483648
  %v789 = vsel %vm668, %v788, %v787
  %v790 = vsub.s32 4, %v766
  %v791 = vsel %vm668, %v790, %v766
  %v792 = vsel %vm667, %v38, %v789
  %v793 = vsel %vm667, 0, %v791
  %v794 = vmul.f32 %v792, %v792
  %v795 = vmul.f32 %v794, -0.001358992
  %v796 = vadd.f32 %v795, 0.041655596
  %v797 = vmul.f32 %v794, %v796
  %v798 = vadd.f32 %v797, -0.4999988
  %v799 = vmul.f32 %v794, %v798
  %v800 = vadd.f32 1.0, %v799
  %v801 = vmul.f32 %v792, %v792
  %v802 = vmul.f32 %v801, -0.00019511016
  %v803 = vadd.f32 %v802, 0.008332121
  %v804 = vmul.f32 %v801, %v803
  %v805 = vadd.f32 %v804, -0.16666654
  %v806 = vmul.f32 %v801, %v805
  %v807 = vadd.f32 %v806, 1.0
  %v808 = vmul.f32 %v807, %v792
  %vm809 = vweird.f32 %v38
  %v810 = vadd.s32 %v793, 3
  %v811 = vand.u32 %v810, 3
  %vm812 = vcmp.lt.s32.totalorder %v811, 2
  %vm813 = vcmp.eq.s32.totalorder %v811, 0
  %v814 = vxor.u32 %v808, 2147483648
  %v815 = vsel %vm813, %v800, %v814
  %vm816 = vcmp.eq.s32.totalorder %v811, 2
  %v817 = vxor.u32 %v800, 2147483648
  %v818 = vsel %vm816, %v817, %v808
  %v819 = vsel %vm812, %v815, %v818
  %v820 = vsel %vm809, nan, %v819
  %v821 = vand.u32 2147483647, %v39
  %vm822 = vcmp.le.f32.partialorder %v821, 0.7853982
  %vm823 = vcmp.lt.s32.totalorder %v39, 0
  %v824 = vand.u32 %v39, 2139095040
  %v825 = vshrl.u32 %v824, 23
  %v826 = vsub.s32 %v825, 127
  %v827 = vand.u32 2147483647, %v39
  %v828 = vand.u32 %v827, 8388607
  %v829 = vor.u32 %v828, 8388608
  %v830 = vsub.s32 0, %v829
  %v831 = vadd.s32 %v826, 1
  %vm832 = vcmp.gt.s32.totalorder %v831, 0
  %v833 = vsel %vm832, %v831, 0
  %v834 = vshrl.u32 %v833, 5
  %v835 = vand.u32 %v833, 31
  %v836 = vsub.s32 32, %v835
  %v837 = vshrl.u32 683565275, %v836
  %v838 = vshll.u32 683565275, %v835
  %v839 = vshrl.u32 2475754826, %v836
  %v840 = vor.u32 %v838, %v839
  %v841 = vshll.u32 2475754826, %v835
  %v842 = vshrl.u32 2131351028, %v836
  %v843 = vor.u32 %v841, %v842
  %v844 = vshll.u32 2131351028, %v835
  %v845 = vshrl.u32 2102212464, %v836
  %v846 = vor.u32 %v844, %v845
  %v847 = vshll.u32 2102212464, %v835
  %v848 = vshrl.u32 920167782, %v836
  %v849 = vor.u32 %v847, %v848
  %v850 = vshll.u32 920167782, %v835
  %v851 = vshrl.u32 1326507024, %v836
  %v852 = vor.u32 %v850, %v851
  %vm853 = vcmp.lt.s32.totalorder %v834, 1
  %vm854 = vcmp.lt.s32.totalorder %v834, 2
  %vm855 = vcmp.lt.s32.totalorder %v834, 3
  %vm856 = vcmp.lt.s32.totalorder %v834, 4
  %v857 = vsel %vm853, %v837, %v840
  %v858 = vsel %vm856, %v846, 2102212464
  %v859 = vsel %vm855, %v843, %v858
  %v860 = vsel %vm854, %v857, %v859
  %v861 = vsel %vm853, %v840, %v843
  %v862 = vsel %vm856, %v849, 920167782
  %v863 = vsel %vm855, %v846, %v862
  %v864 = vsel %vm854, %v861, %v863
  %v865 = vsel %vm853, %v843, %v846
  %v866 = vsel %vm856, %v852, 1326507024
  %v867 = vsel %vm855, %v849, %v866
  %v868 = vsel %vm854, %v865, %v867
  %v869 = vshll.u32 %v829, 8
  %v870 = vand.u32 %v869, 65535
  %v871 = vshrl.u32 %v869, 16
  %v872 = vand.u32 %v868, 65535
  %v873 = vshrl.u32 %v868, 16
  %v874 = vmul.u32 %v870, %v872
  %v875 = vmul.u32 %v870, %v873
  %v876 = vmul.u32 %v871, %v872
  %v877 = vmul.u32 %v871, %v873
  %v878 = vshll.u32 %v875, 16
  %v879 = vshrl.u32 %v875, 16
  %v880 = vshll.u32 %v876, 16
  %v881 = vshrl.u32 %v876, 16
  %vm882 = vc.u32 %v874, %v878
  %v883 = vsel %vm882, 1, 0
  %v884 = vadd.s32 %v874, %v878
  %v885 = vadd.s32 %v877, %v883
  %vm886 = vc.u32 %v884, %v880
  %v887 = vsel %vm886, 1, 0
  %v888 = vadd.s32 %v884, %v880
  %v889 = vadd.s32 %v885, %v887
  %v890 = vadd.s32 %v889, %v879
  %v891 = vadd.s32 %v890, %v881
  %v892 = vand.u32 %v869, 65535
  %v893 = vshrl.u32 %v869, 16
  %v894 = vand.u32 %v864, 65535
  %v895 = vshrl.u32 %v864, 16
  %v896 = vmul.u32 %v892, %v894
  %v897 = vmul.u32 %v892, %v895
  %v898 = vmul.u32 %v893, %v894
  %v899 = vmul.u32 %v893, %v895
  %v900 = vshll.u32 %v897, 16
  %v901 = vshrl.u32 %v897, 16
  %v902 = vshll.u32 %v898, 16
  %v903 = vshrl.u32 %v898, 16
  %vm904 = vc.u32 %v896, %v900
  %v905 = vsel %vm904, 1, 0
  %v906 = vadd.s32 %v896, %v900
  %v907 = vadd.s32 %v899, %v905
  %vm908 = vc.u32 %v906, %v902
  %v909 = vsel %vm908, 1, 0
  %v910 = vadd.s32 %v906, %v902
  %v911 = vadd.s32 %v907, %v909
  %v912 = vadd.s32 %v911, %v901
  %v913 = vadd.s32 %v912, %v903
  %v914 = vmul.u32 %v869, %v860
  %v915 = vadd.s32 %v891, %v910
  %vm916 = vc.u32 %v891, %v910
  %v917 = vadd.s32 %v913, 1
  %v918 = vsel %vm916, %v917, %v913
  %v919 = vadd.s32 %v914, %v918
  %v920 = vadd.s32 %v919, 536870912
  %v921 = vshrl.u32 %v920, 30
  %v922 = vshll.u32 %v921, 30
  %v923 = vsub.s32 %v919, %v922
  %vm924 = vcmp.lt.s32.totalorder %v923, 0
  %v925 = vsub.s32 0, %v923
  %v926 = vsel %vm924, %v925, %v923
  %v927 = vclz %v926
  %v928 = vsub.s32 %v927, 2
  %vm929 = vcmp.gt.s32.totalorder 0, %v928
  %v930 = vsel %vm929, 0, %v928
  %v931 = vsub.s32 32, %v930
  %v932 = vshll.u32 %v923, %v930
  %v933 = vshrl.u32 %v915, %v931
  %v934 = vor.u32 %v932, %v933
  %v935 = vsub.s32 4294967266, %v930
  %v936 = vadd.s32 %v935, 127
  %v937 = vshll.u32 %v936, 23
  %v938 = vor.u32 4788187, %v937
  %v939 = vand.u32 2147483647, %v938
  %v941 = vcvt.s32.f32 %v934
  %v942 = vmul.f32 %v941, %v939
  %v943 = vxor.u32 %v942, 2147483648
  %v944 = vsel %vm823, %v943, %v942
  %v945 = vsub.s32 4, %v921
  %v946 = vsel %vm823, %v945, %v921
  %v947 = vsel %vm822, %v39, %v944
  %v948 = vsel %vm822, 0, %v946
  %v949 = vmul.f32 %v947, %v947
  %v950 = vmul.f32 %v949, -0.001358992
  %v951 = vadd.f32 %v950, 0.041655596
  %v952 = vmul.f32 %v949, %v951
  %v953 = vadd.f32 %v952, -0.4999988
  %v954 = vmul.f32 %v949, %v953
  %v955 = vadd.f32 1.0, %v954
  %v956 = vmul.f32 %v947, %v947
  %v957 = vmul.f32 %v956, -0.00019511016
  %v958 = vadd.f32 %v957, 0.008332121
  %v959 = vmul.f32 %v956, %v958
  %v960 = vadd.f32 %v959, -0.16666654
  %v961 = vmul.f32 %v956, %v960
  %v962 = vadd.f32 %v961, 1.0
  %v963 = vmul.f32 %v962, %v947
  %vm964 = vweird.f32 %v39
  %v965 = vadd.s32 %v948, 3
  %v966 = vand.u32 %v965, 3
  %vm967 = vcmp.lt.s32.totalorder %v966, 2
  %vm968 = vcmp.eq.s32.totalorder %v966, 0
  %v969 = vxor.u32 %v963, 2147483648
  %v970 = vsel %vm968, %v955, %v969
  %vm971 = vcmp.eq.s32.totalorder %v966, 2
  %v972 = vxor.u32 %v955, 2147483648
  %v973 = vsel %vm971, %v972, %v963
  %v974 = vsel %vm967, %v970, %v973
  %v975 = vsel %vm964, nan, %v974
  %v976 = vand.u32 2147483647, %v40
  %vm977 = vcmp.le.f32.partialorder %v976, 0.7853982
  %vm978 = vcmp.lt.s32.totalorder %v40, 0
  %v979 = vand.u32 %v40, 2139095040
  %v980 = vshrl.u32 %v979, 23
  %v981 = vsub.s32 %v980, 127
  %v982 = vand.u32 2147483647, %v40
  %v983 = vand.u32 %v982, 8388607
  %v984 = vor.u32 %v983, 8388608
  %v985 = vsub.s32 0, %v984
  %v986 = vadd.s32 %v981, 1
  %vm987 = vcmp.gt.s32.totalorder %v986, 0
  %v988 = vsel %vm987, %v986, 0
  %v989 = vshrl.u32 %v988, 5
  %v990 = vand.u32 %v988, 31
  %v991 = vsub.s32 32, %v990
  %v992 = vshrl.u32 683565275, %v991
  %v993 = vshll.u32 683565275, %v990
  %v994 = vshrl.u32 2475754826, %v991
  %v995 = vor.u32 %v993, %v994
  %v996 = vshll.u32 2475754826, %v990
  %v997 = vshrl.u32 2131351028, %v991
  %v998 = vor.u32 %v996, %v997
  %v999 = vshll.u32 2131351028, %v990
  %v1000 = vshrl.u32 2102212464, %v991
  %v1001 = vor.u32 %v999, %v1000
  %v1002 = vshll.u32 2102212464, %v990
  %v1003 = vshrl.u32 920167782, %v991
  %v1004 = vor.u32 %v1002, %v1003
  %v1005 = vshll.u32 920167782, %v990
  %v1006 = vshrl.u32 1326507024, %v991
  %v1007 = vor.u32 %v1005, %v1006
  %vm1008 = vcmp.lt.s32.totalorder %v989, 1
  %vm1009 = vcmp.lt.s32.totalorder %v989, 2
  %vm1010 = vcmp.lt.s32.totalorder %v989, 3
  %vm1011 = vcmp.lt.s32.totalorder %v989, 4
  %v1012 = vsel %vm1008, %v992, %v995
  %v1013 = vsel %vm1011, %v1001, 2102212464
  %v1014 = vsel %vm1010, %v998, %v1013
  %v1015 = vsel %vm1009, %v1012, %v1014
  %v1016 = vsel %vm1008, %v995, %v998
  %v1017 = vsel %vm1011, %v1004, 920167782
  %v1018 = vsel %vm1010, %v1001, %v1017
  %v1019 = vsel %vm1009, %v1016, %v1018
  %v1020 = vsel %vm1008, %v998, %v1001
  %v1021 = vsel %vm1011, %v1007, 1326507024
  %v1022 = vsel %vm1010, %v1004, %v1021
  %v1023 = vsel %vm1009, %v1020, %v1022
  %v1024 = vshll.u32 %v984, 8
  %v1025 = vand.u32 %v1024, 65535
  %v1026 = vshrl.u32 %v1024, 16
  %v1027 = vand.u32 %v1023, 65535
  %v1028 = vshrl.u32 %v1023, 16
  %v1029 = vmul.u32 %v1025, %v1027
  %v1030 = vmul.u32 %v1025, %v1028
  %v1031 = vmul.u32 %v1026, %v1027
  %v1032 = vmul.u32 %v1026, %v1028
  %v1033 = vshll.u32 %v1030, 16
  %v1034 = vshrl.u32 %v1030, 16
  %v1035 = vshll.u32 %v1031, 16
  %v1036 = vshrl.u32 %v1031, 16
  %vm1037 = vc.u32 %v1029, %v1033
  %v1038 = vsel %vm1037, 1, 0
  %v1039 = vadd.s32 %v1029, %v1033
  %v1040 = vadd.s32 %v1032, %v1038
  %vm1041 = vc.u32 %v1039, %v1035
  %v1042 = vsel %vm1041, 1, 0
  %v1043 = vadd.s32 %v1039, %v1035
  %v1044 = vadd.s32 %v1040, %v1042
  %v1045 = vadd.s32 %v1044, %v1034
  %v1046 = vadd.s32 %v1045, %v1036
  %v1047 = vand.u32 %v1024, 65535
  %v1048 = vshrl.u32 %v1024, 16
  %v1049 = vand.u32 %v1019, 65535
  %v1050 = vshrl.u32 %v1019, 16
  %v1051 = vmul.u32 %v1047, %v1049
  %v1052 = vmul.u32 %v1047, %v1050
  %v1053 = vmul.u32 %v1048, %v1049
  %v1054 = vmul.u32 %v1048, %v1050
  %v1055 = vshll.u32 %v1052, 16
  %v1056 = vshrl.u32 %v1052, 16
  %v1057 = vshll.u32 %v1053, 16
  %v1058 = vshrl.u32 %v1053, 16
  %vm1059 = vc.u32 %v1051, %v1055
  %v1060 = vsel %vm1059, 1, 0
  %v1061 = vadd.s32 %v1051, %v1055
  %v1062 = vadd.s32 %v1054, %v1060
  %vm1063 = vc.u32 %v1061, %v1057
  %v1064 = vsel %vm1063, 1, 0
  %v1065 = vadd.s32 %v1061, %v1057
  %v1066 = vadd.s32 %v1062, %v1064
  %v1067 = vadd.s32 %v1066, %v1056
  %v1068 = vadd.s32 %v1067, %v1058
  %v1069 = vmul.u32 %v1024, %v1015
  %v1070 = vadd.s32 %v1046, %v1065
  %vm1071 = vc.u32 %v1046, %v1065
  %v1072 = vadd.s32 %v1068, 1
  %v1073 = vsel %vm1071, %v1072, %v1068
  %v1074 = vadd.s32 %v1069, %v1073
  %v1075 = vadd.s32 %v1074, 536870912
  %v1076 = vshrl.u32 %v1075, 30
  %v1077 = vshll.u32 %v1076, 30
  %v1078 = vsub.s32 %v1074, %v1077
  %vm1079 = vcmp.lt.s32.totalorder %v1078, 0
  %v1080 = vsub.s32 0, %v1078
  %v1081 = vsel %vm1079, %v1080, %v1078
  %v1082 = vclz %v1081
  %v1083 = vsub.s32 %v1082, 2
  %vm1084 = vcmp.gt.s32.totalorder 0, %v1083
  %v1085 = vsel %vm1084, 0, %v1083
  %v1086 = vsub.s32 32, %v1085
  %v1087 = vshll.u32 %v1078, %v1085
  %v1088 = vshrl.u32 %v1070, %v1086
  %v1089 = vor.u32 %v1087, %v1088
  %v1090 = vsub.s32 4294967266, %v1085
  %v1091 = vadd.s32 %v1090, 127
  %v1092 = vshll.u32 %v1091, 23
  %v1093 = vor.u32 4788187, %v1092
  %v1094 = vand.u32 2147483647, %v1093
  %v1096 = vcvt.s32.f32 %v1089
  %v1097 = vmul.f32 %v1096, %v1094
  %v1098 = vxor.u32 %v1097, 2147483648
  %v1099 = vsel %vm978, %v1098, %v1097
  %v1100 = vsub.s32 4, %v1076
  %v1101 = vsel %vm978, %v1100, %v1076
  %v1102 = vsel %vm977, %v40, %v1099
  %v1103 = vsel %vm977, 0, %v1101
  %v1104 = vmul.f32 %v1102, %v1102
  %v1105 = vmul.f32 %v1104, -0.001358992
  %v1106 = vadd.f32 %v1105, 0.041655596
  %v1107 = vmul.f32 %v1104, %v1106
  %v1108 = vadd.f32 %v1107, -0.4999988
  %v1109 = vmul.f32 %v1104, %v1108
  %v1110 = vadd.f32 1.0, %v1109
  %v1111 = vmul.f32 %v1102, %v1102
  %v1112 = vmul.f32 %v1111, -0.00019511016
  %v1113 = vadd.f32 %v1112, 0.008332121
  %v1114 = vmul.f32 %v1111, %v1113
  %v1115 = vadd.f32 %v1114, -0.16666654
  %v1116 = vmul.f32 %v1111, %v1115
  %v1117 = vadd.f32 %v1116, 1.0
  %v1118 = vmul.f32 %v1117, %v1102
  %vm1119 = vweird.f32 %v40
  %v1120 = vadd.s32 %v1103, 3
  %v1121 = vand.u32 %v1120, 3
  %vm1122 = vcmp.lt.s32.totalorder %v1121, 2
  %vm1123 = vcmp.eq.s32.totalorder %v1121, 0
  %v1124 = vxor.u32 %v1118, 2147483648
  %v1125 = vsel %vm1123, %v1110, %v1124
  %vm1126 = vcmp.eq.s32.totalorder %v1121, 2
  %v1127 = vxor.u32 %v1110, 2147483648
  %v1128 = vsel %vm1126, %v1127, %v1118
  %v1129 = vsel %vm1122, %v1125, %v1128
  %v1130 = vsel %vm1119, nan, %v1129
  %v1131 = vand.u32 2147483647, %v41
  %vm1132 = vcmp.le.f32.partialorder %v1131, 0.7853982
  %vm1133 = vcmp.lt.s32.totalorder %v41, 0
  %v1134 = vand.u32 %v41, 2139095040
  %v1135 = vshrl.u32 %v1134, 23
  %v1136 = vsub.s32 %v1135, 127
  %v1137 = vand.u32 2147483647, %v41
  %v1138 = vand.u32 %v1137, 8388607
  %v1139 = vor.u32 %v1138, 8388608
  %v1140 = vsub.s32 0, %v1139
  %v1141 = vadd.s32 %v1136, 1
  %vm1142 = vcmp.gt.s32.totalorder %v1141, 0
  %v1143 = vsel %vm1142, %v1141, 0
  %v1144 = vshrl.u32 %v1143, 5
  %v1145 = vand.u32 %v1143, 31
  %v1146 = vsub.s32 32, %v1145
  %v1147 = vshrl.u32 683565275, %v1146
  %v1148 = vshll.u32 683565275, %v1145
  %v1149 = vshrl.u32 2475754826, %v1146
  %v1150 = vor.u32 %v1148, %v1149
  %v1151 = vshll.u32 2475754826, %v1145
  %v1152 = vshrl.u32 2131351028, %v1146
  %v1153 = vor.u32 %v1151, %v1152
  %v1154 = vshll.u32 2131351028, %v1145
  %v1155 = vshrl.u32 2102212464, %v1146
  %v1156 = vor.u32 %v1154, %v1155
  %v1157 = vshll.u32 2102212464, %v1145
  %v1158 = vshrl.u32 920167782, %v1146
  %v1159 = vor.u32 %v1157, %v1158
  %v1160 = vshll.u32 920167782, %v1145
  %v1161 = vshrl.u32 1326507024, %v1146
  %v1162 = vor.u32 %v1160, %v1161
  %vm1163 = vcmp.lt.s32.totalorder %v1144, 1
  %vm1164 = vcmp.lt.s32.totalorder %v1144, 2
  %vm1165 = vcmp.lt.s32.totalorder %v1144, 3
  %vm1166 = vcmp.lt.s32.totalorder %v1144, 4
  %v1167 = vsel %vm1163, %v1147, %v1150
  %v1168 = vsel %vm1166, %v1156, 2102212464
  %v1169 = vsel %vm1165, %v1153, %v1168
  %v1170 = vsel %vm1164, %v1167, %v1169
  %v1171 = vsel %vm1163, %v1150, %v1153
  %v1172 = vsel %vm1166, %v1159, 920167782
  %v1173 = vsel %vm1165, %v1156, %v1172
  %v1174 = vsel %vm1164, %v1171, %v1173
  %v1175 = vsel %vm1163, %v1153, %v1156
  %v1176 = vsel %vm1166, %v1162, 1326507024
  %v1177 = vsel %vm1165, %v1159, %v1176
  %v1178 = vsel %vm1164, %v1175, %v1177
  %v1179 = vshll.u32 %v1139, 8
  %v1180 = vand.u32 %v1179, 65535
  %v1181 = vshrl.u32 %v1179, 16
  %v1182 = vand.u32 %v1178, 65535
  %v1183 = vshrl.u32 %v1178, 16
  %v1184 = vmul.u32 %v1180, %v1182
  %v1185 = vmul.u32 %v1180, %v1183
  %v1186 = vmul.u32 %v1181, %v1182
  %v1187 = vmul.u32 %v1181, %v1183
  %v1188 = vshll.u32 %v1185, 16
  %v1189 = vshrl.u32 %v1185, 16
  %v1190 = vshll.u32 %v1186, 16
  %v1191 = vshrl.u32 %v1186, 16
  %vm1192 = vc.u32 %v1184, %v1188
  %v1193 = vsel %vm1192, 1, 0
  %v1194 = vadd.s32 %v1184, %v1188
  %v1195 = vadd.s32 %v1187, %v1193
  %vm1196 = vc.u32 %v1194, %v1190
  %v1197 = vsel %vm1196, 1, 0
  %v1198 = vadd.s32 %v1194, %v1190
  %v1199 = vadd.s32 %v1195, %v1197
  %v1200 = vadd.s32 %v1199, %v1189
  %v1201 = vadd.s32 %v1200, %v1191
  %v1202 = vand.u32 %v1179, 65535
  %v1203 = vshrl.u32 %v1179, 16
  %v1204 = vand.u32 %v1174, 65535
  %v1205 = vshrl.u32 %v1174, 16
  %v1206 = vmul.u32 %v1202, %v1204
  %v1207 = vmul.u32 %v1202, %v1205
  %v1208 = vmul.u32 %v1203, %v1204
  %v1209 = vmul.u32 %v1203, %v1205
  %v1210 = vshll.u32 %v1207, 16
  %v1211 = vshrl.u32 %v1207, 16
  %v1212 = vshll.u32 %v1208, 16
  %v1213 = vshrl.u32 %v1208, 16
  %vm1214 = vc.u32 %v1206, %v1210
  %v1215 = vsel %vm1214, 1, 0
  %v1216 = vadd.s32 %v1206, %v1210
  %v1217 = vadd.s32 %v1209, %v1215
  %vm1218 = vc.u32 %v1216, %v1212
  %v1219 = vsel %vm1218, 1, 0
  %v1220 = vadd.s32 %v1216, %v1212
  %v1221 = vadd.s32 %v1217, %v1219
  %v1222 = vadd.s32 %v1221, %v1211
  %v1223 = vadd.s32 %v1222, %v1213
  %v1224 = vmul.u32 %v1179, %v1170
  %v1225 = vadd.s32 %v1201, %v1220
  %vm1226 = vc.u32 %v1201, %v1220
  %v1227 = vadd.s32 %v1223, 1
  %v1228 = vsel %vm1226, %v1227, %v1223
  %v1229 = vadd.s32 %v1224, %v1228
  %v1230 = vadd.s32 %v1229, 536870912
  %v1231 = vshrl.u32 %v1230, 30
  %v1232 = vshll.u32 %v1231, 30
  %v1233 = vsub.s32 %v1229, %v1232
  %vm1234 = vcmp.lt.s32.totalorder %v1233, 0
  %v1235 = vsub.s32 0, %v1233
  %v1236 = vsel %vm1234, %v1235, %v1233
  %v1237 = vclz %v1236
  %v1238 = vsub.s32 %v1237, 2
  %vm1239 = vcmp.gt.s32.totalorder 0, %v1238
  %v1240 = vsel %vm1239, 0, %v1238
  %v1241 = vsub.s32 32, %v1240
  %v1242 = vshll.u32 %v1233, %v1240
  %v1243 = vshrl.u32 %v1225, %v1241
  %v1244 = vor.u32 %v1242, %v1243
  %v1245 = vsub.s32 4294967266, %v1240
  %v1246 = vadd.s32 %v1245, 127
  %v1247 = vshll.u32 %v1246, 23
  %v1248 = vor.u32 4788187, %v1247
  %v1249 = vand.u32 2147483647, %v1248
  %v1251 = vcvt.s32.f32 %v1244
  %v1252 = vmul.f32 %v1251, %v1249
  %v1253 = vxor.u32 %v1252, 2147483648
  %v1254 = vsel %vm1133, %v1253, %v1252
  %v1255 = vsub.s32 4, %v1231
  %v1256 = vsel %vm1133, %v1255, %v1231
  %v1257 = vsel %vm1132, %v41, %v1254
  %v1258 = vsel %vm1132, 0, %v1256
  %v1259 = vmul.f32 %v1257, %v1257
  %v1260 = vmul.f32 %v1259, -0.001358992
  %v1261 = vadd.f32 %v1260, 0.041655596
  %v1262 = vmul.f32 %v1259, %v1261
  %v1263 = vadd.f32 %v1262, -0.4999988
  %v1264 = vmul.f32 %v1259, %v1263
  %v1265 = vadd.f32 1.0, %v1264
  %v1266 = vmul.f32 %v1257, %v1257
  %v1267 = vmul.f32 %v1266, -0.00019511016
  %v1268 = vadd.f32 %v1267, 0.008332121
  %v1269 = vmul.f32 %v1266, %v1268
  %v1270 = vadd.f32 %v1269, -0.16666654
  %v1271 = vmul.f32 %v1266, %v1270
  %v1272 = vadd.f32 %v1271, 1.0
  %v1273 = vmul.f32 %v1272, %v1257
  %vm1274 = vweird.f32 %v41
  %v1275 = vadd.s32 %v1258, 3
  %v1276 = vand.u32 %v1275, 3
  %vm1277 = vcmp.lt.s32.totalorder %v1276, 2
  %vm1278 = vcmp.eq.s32.totalorder %v1276, 0
  %v1279 = vxor.u32 %v1273, 2147483648
  %v1280 = vsel %vm1278, %v1265, %v1279
  %vm1281 = vcmp.eq.s32.totalorder %v1276, 2
  %v1282 = vxor.u32 %v1265, 2147483648
  %v1283 = vsel %vm1281, %v1282, %v1273
  %v1284 = vsel %vm1277, %v1280, %v1283
  %v1285 = vsel %vm1274, nan, %v1284
  %v1286 = vmul.f32 %v42, %v820
  %v1287 = vmul.f32 %v43, %v975
  %v1288 = vmul.f32 %v44, %v1130
  %v1289 = vmul.f32 %v45, %v1285
  %v1290 = vld [vmem:[%s3] sm:$0xff]
  %v1291 = vld [vmem:[%s3 + $0x8] sm:$0xff]
  %v1292 = vld [vmem:[%s3 + $0x10] sm:$0xff]
  %v1293 = vld [vmem:[%s3 + $0x18] sm:$0xff]
  %v1294 = vld [vmem:[%s4] sm:$0xff]
  %v1295 = vld [vmem:[%s4 + $0x8] sm:$0xff]
  %v1296 = vld [vmem:[%s4 + $0x10] sm:$0xff]
  %v1297 = vld [vmem:[%s4 + $0x18] sm:$0xff]
  %vm1298 = vcmask 261120
  %v1300 = vsel %vm1298, %v1294, 0
  %v1303 = vsel %vm1298, %v1295, 0
  %v1306 = vsel %vm1298, %v1296, 0
  %v1309 = vsel %vm1298, %v1297, 0
  %1311 = vmatpush.msra.mxu0 0.0
  %1312 = vmatpush.msra.mxu0 0.0
  %1313 = vmatpush.msra.mxu0 0.0
  %1314 = vmatpush.msra.mxu0 0.0
  %1315 = vmatpush.msra.mxu0 0.0
  %1316 = vmatpush.msra.mxu0 0.0
  %1317 = vmatpush.msra.mxu0 0.0
  %1318 = vmatpush.msra.mxu0 0.0
  %1319 = vmatpush.msra.mxu0 0.0
  %1320 = vmatpush.msra.mxu0 0.0
  %1321 = vmatpush.msra.mxu0 0.0
  %1322 = vmatpush.msra.mxu0 0.0
  %1323 = vmatpush.msra.mxu0 %v1289
  %1324 = vmatpush.msra.mxu0 %v1288
  %1325 = vmatpush.msra.mxu0 %v1287
  %1326 = vmatpush.msra.mxu0 %v1286
  %1327 = vmatmul.f32.gmra.mxu0 %v1300
  %v1328 = vpop.f32.mrf.mxu0
  %v1329 = vadd.f32 0.0, %v1328
  %1330 = vmatmul.f32.gmra.mxu0 %v1303
  %v1331 = vpop.f32.mrf.mxu0
  %v1332 = vadd.f32 0.0, %v1331
  %1333 = vmatmul.f32.gmra.mxu0 %v1306
  %v1334 = vpop.f32.mrf.mxu0
  %v1335 = vadd.f32 0.0, %v1334
  %1336 = vmatmul.f32.gmra.mxu0 %v1309
  %v1337 = vpop.f32.mrf.mxu0
  %v1338 = vadd.f32 0.0, %v1337
  %1339 = vdwg.mxu0
  %v1341 = vsel %vm1298, %v1290, 0
  %v1344 = vsel %vm1298, %v1291, 0
  %v1347 = vsel %vm1298, %v1292, 0
  %v1350 = vsel %vm1298, %v1293, 0
  %1352 = vmatpush.msra.mxu0 0.0
  %1353 = vmatpush.msra.mxu0 0.0
  %1354 = vmatpush.msra.mxu0 0.0
  %1355 = vmatpush.msra.mxu0 0.0
  %1356 = vmatpush.msra.mxu0 0.0
  %1357 = vmatpush.msra.mxu0 0.0
  %1358 = vmatpush.msra.mxu0 0.0
  %1359 = vmatpush.msra.mxu0 0.0
  %1360 = vmatpush.msra.mxu0 0.0
  %1361 = vmatpush.msra.mxu0 0.0
  %1362 = vmatpush.msra.mxu0 0.0
  %1363 = vmatpush.msra.mxu0 0.0
  %1364 = vmatpush.msra.mxu0 %v665
  %1365 = vmatpush.msra.mxu0 %v664
  %1366 = vmatpush.msra.mxu0 %v663
  %1367 = vmatpush.msra.mxu0 %v662
  %1368 = vmatmul.f32.gmra.mxu0 %v1341
  %v1369 = vpop.f32.mrf.mxu0
  %v1370 = vadd.f32 %v1329, %v1369
  %1371 = vmatmul.f32.gmra.mxu0 %v1344
  %v1372 = vpop.f32.mrf.mxu0
  %v1373 = vadd.f32 %v1332, %v1372
  %1374 = vmatmul.f32.gmra.mxu0 %v1347
  %v1375 = vpop.f32.mrf.mxu0
  %v1376 = vadd.f32 %v1335, %v1375
  %1377 = vmatmul.f32.gmra.mxu0 %v1350
  %v1378 = vpop.f32.mrf.mxu0
  %v1379 = vadd.f32 %v1338, %v1378
  %1380 = vdwg.mxu0
  %v1381 = vld [vmem:[%s5] sm:$0xff]
  %v1382 = vld [vmem:[%s5 + $0x8] sm:$0xff]
  %v1383 = vld [vmem:[%s5 + $0x10] sm:$0xff]
  %v1384 = vld [vmem:[%s5 + $0x18] sm:$0xff]
  %v1386 = vsel %vm1298, %v1370, 0
  %v1389 = vsel %vm1298, %v1373, 0
  %v1392 = vsel %vm1298, %v1376, 0
  %v1395 = vsel %vm1298, %v1379, 0
  %1397 = vmatpush.msra.mxu0 0.0
  %1398 = vmatpush.msra.mxu0 0.0
  %1399 = vmatpush.msra.mxu0 0.0
  %1400 = vmatpush.msra.mxu0 0.0
  %1401 = vmatpush.msra.mxu0 0.0
  %1402 = vmatpush.msra.mxu0 0.0
  %1403 = vmatpush.msra.mxu0 0.0
  %1404 = vmatpush.msra.mxu0 0.0
  %1405 = vmatpush.msra.mxu0 0.0
  %1406 = vmatpush.msra.mxu0 0.0
  %1407 = vmatpush.msra.mxu0 0.0
  %1408 = vmatpush.msra.mxu0 0.0
  %1409 = vmatpush.msra.mxu0 %v1384
  %1410 = vmatpush.msra.mxu0 %v1383
  %1411 = vmatpush.msra.mxu0 %v1382
  %1412 = vmatpush.msra.mxu0 %v1381
  %1413 = vmatmul.f32.gmra.mxu0 %v1386
  %v1414 = vpop.f32.mrf.mxu0
  %v1415 = vadd.f32 0.0, %v1414
  %1416 = vmatmul.f32.gmra.mxu0 %v1389
  %v1417 = vpop.f32.mrf.mxu0
  %v1418 = vadd.f32 0.0, %v1417
  %1419 = vmatmul.f32.gmra.mxu0 %v1392
  %v1420 = vpop.f32.mrf.mxu0
  %v1421 = vadd.f32 0.0, %v1420
  %1422 = vmatmul.f32.gmra.mxu0 %v1395
  %v1423 = vpop.f32.mrf.mxu0
  %v1424 = vadd.f32 0.0, %v1423
  %1425 = vdwg.mxu0
  %v1426 = vld [vmem:[%s6] sm:$0xff]
  %v1427 = vld [vmem:[%s6 + $0x8] sm:$0xff]
  %v1428 = vld [vmem:[%s6 + $0x10] sm:$0xff]
  %v1429 = vld [vmem:[%s6 + $0x18] sm:$0xff]
  %1430 = vmatpush.msra.mxu0 0.0
  %1431 = vmatpush.msra.mxu0 0.0
  %1432 = vmatpush.msra.mxu0 0.0
  %1433 = vmatpush.msra.mxu0 0.0
  %1434 = vmatpush.msra.mxu0 0.0
  %1435 = vmatpush.msra.mxu0 0.0
  %1436 = vmatpush.msra.mxu0 0.0
  %1437 = vmatpush.msra.mxu0 0.0
  %1438 = vmatpush.msra.mxu0 0.0
  %1439 = vmatpush.msra.mxu0 0.0
  %1440 = vmatpush.msra.mxu0 0.0
  %1441 = vmatpush.msra.mxu0 0.0
  %1442 = vmatpush.msra.mxu0 %v1429
  %1443 = vmatpush.msra.mxu0 %v1428
  %1444 = vmatpush.msra.mxu0 %v1427
  %1445 = vmatpush.msra.mxu0 %v1426
  %1446 = vmatmul.f32.gmra.mxu0 %v1386
  %v1447 = vpop.f32.mrf.mxu0
  %v1448 = vadd.f32 0.0, %v1447
  %1449 = vmatmul.f32.gmra.mxu0 %v1389
  %v1450 = vpop.f32.mrf.mxu0
  %v1451 = vadd.f32 0.0, %v1450
  %1452 = vmatmul.f32.gmra.mxu0 %v1392
  %v1453 = vpop.f32.mrf.mxu0
  %v1454 = vadd.f32 0.0, %v1453
  %1455 = vmatmul.f32.gmra.mxu0 %v1395
  %v1456 = vpop.f32.mrf.mxu0
  %v1457 = vadd.f32 0.0, %v1456
  %1458 = vdwg.mxu0
  %v1459 = vsub.f32 %v1415, %v1454
  %v1460 = vsub.f32 %v1418, %v1457
  %v1461 = vadd.f32 %v1448, %v1421
  %v1462 = vadd.f32 %v1451, %v1424
  %v1463 = vmul.f32 %v1459, %v1459
  %v1464 = vmul.f32 %v1460, %v1460
  %v1465 = vmul.f32 %v1461, %v1461
  %v1466 = vmul.f32 %v1462, %v1462
  %v1467 = vadd.f32 %v1463, %v1465
  %v1468 = vadd.f32 %v1464, %v1466
  %v1469 = vmul.f32 %v1467, 2.4957012e-06
  %v1470 = vmul.f32 %v1468, 2.4957012e-06
  %vm1471 = vcmask 130048
  %1472 = vst.msk [vmem:[%s7] sm:$0xff] %vm1471, %v1469
  %1473 = vst.msk [vmem:[%s7 + $0x8] sm:$0xff] %vm1471, %v1470
  // Predicated region
  $region30: #{_forward_pipeline.2} parent=0 // pred_check
    _
  $region31: #{_forward_pipeline.2} parent=0 // pred_check_branch
    %1475 = sbr.rel (0) target = $region33
  $region32: #{_forward_pipeline.2} parent=0 // pred_region
    _
  $region33: #{_forward_pipeline.2} parent=0 // pred_fallthru
    _
  // Predicated region
  $region34: #{_forward_pipeline.2} parent=0 // pred_check
    _
  $region35: #{_forward_pipeline.2} parent=0 // pred_check_branch
    %1477 = sbr.rel (0) target = $region37
  $region36: #{_forward_pipeline.2} parent=0 // pred_region
    _
  $region37: #{_forward_pipeline.2} parent=0 // pred_fallthru
    _

// kernel: _forward_pipeline.3
$region0: #{_forward_pipeline.3}
  #allocation0 [shape = 'u32[]', space=smem, size = 0x4, offset = 0x4, fixed_abs, tag = 'smem constant byte address 0x4 - core index']
  #allocation1 [shape = 'u32[72,128]{1,0:T(1,128)}', space=vmem, size = 0x9000, scoped, tag = 'internal scratch']
  %s0 = inlined_call_operand.vmem [shape: f32[96,512], index: 0, kind: input, shape index: {}]
  %s1 = inlined_call_operand.vmem [shape: f32[512,16], index: 1, kind: input, shape index: {}]
  %s2 = inlined_call_operand.vmem [shape: f32[96,16], index: 2, kind: input, shape index: {}]
  %s3 = inlined_call_operand.hbm [shape: f32[96,16], index: 3, kind: output, shape index: {}]
  %s4 = sld [smem:[#allocation0]]
  $region22: #{_forward_pipeline.3} parent=0
    _
  %s6 = ssub.s32 1, %s4
  %s7 = scalar_select 0, %s6, %s4
  $region1: #{_forward_pipeline.3} parent=0
    #allocation2 [shape = 'u8[49152]{0}', space=vmem, size = 0xc000, scoped, tag = 'output window, operand 0, single buffered']
    #allocation3 [shape = 's32[1]{0}', space=sflag, size = 0x4, scoped, tag = 'scoped memory for _forward_pipeline.3']
    %8 = vsyncpa [#allocation3], 0
    // Predicated region
    $region2: #{_forward_pipeline.3} parent=1 // pred_check
      _
    $region3: #{_forward_pipeline.3} parent=1 // pred_check_branch
      %10 = sbr.rel (0) target = $region5
    $region4: #{_forward_pipeline.3} parent=1 // pred_region
      _
    $region5: #{_forward_pipeline.3} parent=1 // pred_fallthru
      _
    // Predicated region
    $region6: #{_forward_pipeline.3} parent=1 // pred_check
      _
    $region7: #{_forward_pipeline.3} parent=1 // pred_check_branch
      %12 = sbr.rel (0) target = $region9
    $region8: #{_forward_pipeline.3} parent=1 // pred_region
      _
    $region9: #{_forward_pipeline.3} parent=1 // pred_fallthru
      _
    // Predicated region
    $region10: #{_forward_pipeline.3} parent=1 // pred_check
      _
    $region11: #{_forward_pipeline.3} parent=1 // pred_check_branch
      %14 = sbr.rel (0) target = $region13
    $region12: #{_forward_pipeline.3} parent=1 // pred_region
      _
    $region13: #{_forward_pipeline.3} parent=1 // pred_fallthru
      _
    %v15 = vld [vmem:[%s0] sm:$0xff]
    %v16 = vld [vmem:[%s0 + $0x8] sm:$0xff]
    %v17 = vld [vmem:[%s0 + $0x10] sm:$0xff]
    %v18 = vld [vmem:[%s0 + $0x18] sm:$0xff]
    %v19 = vld [vmem:[%s0 + $0x20] sm:$0xff]
    %v20 = vld [vmem:[%s0 + $0x28] sm:$0xff]
    %v21 = vld [vmem:[%s0 + $0x30] sm:$0xff]
    %v22 = vld [vmem:[%s0 + $0x38] sm:$0xff]
    %v23 = vld [vmem:[%s0 + $0x40] sm:$0xff]
    %v24 = vld [vmem:[%s0 + $0x48] sm:$0xff]
    %v25 = vld [vmem:[%s0 + $0x50] sm:$0xff]
    %v26 = vld [vmem:[%s0 + $0x58] sm:$0xff]
    %v27 = vld [vmem:[%s0 + $0x60] sm:$0xff]
    %v28 = vld [vmem:[%s0 + $0x68] sm:$0xff]
    %v29 = vld [vmem:[%s0 + $0x70] sm:$0xff]
    %v30 = vld [vmem:[%s0 + $0x78] sm:$0xff]
    %v31 = vld [vmem:[%s0 + $0x80] sm:$0xff]
    %v32 = vld [vmem:[%s0 + $0x88] sm:$0xff]
    %v33 = vld [vmem:[%s0 + $0x90] sm:$0xff]
    %v34 = vld [vmem:[%s0 + $0x98] sm:$0xff]
    %v35 = vld [vmem:[%s0 + $0xa0] sm:$0xff]
    %v36 = vld [vmem:[%s0 + $0xa8] sm:$0xff]
    %v37 = vld [vmem:[%s0 + $0xb0] sm:$0xff]
    %v38 = vld [vmem:[%s0 + $0xb8] sm:$0xff]
    %v39 = vld [vmem:[%s0 + $0xc0] sm:$0xff]
    %v40 = vld [vmem:[%s0 + $0xc8] sm:$0xff]
    %v41 = vld [vmem:[%s0 + $0xd0] sm:$0xff]
    %v42 = vld [vmem:[%s0 + $0xd8] sm:$0xff]
    %v43 = vld [vmem:[%s0 + $0xe0] sm:$0xff]
    %v44 = vld [vmem:[%s0 + $0xe8] sm:$0xff]
    %v45 = vld [vmem:[%s0 + $0xf0] sm:$0xff]
    %v46 = vld [vmem:[%s0 + $0xf8] sm:$0xff]
    %v47 = vld [vmem:[%s0 + $0x100] sm:$0xff]
    %v48 = vld [vmem:[%s0 + $0x108] sm:$0xff]
    %v49 = vld [vmem:[%s0 + $0x110] sm:$0xff]
    %v50 = vld [vmem:[%s0 + $0x118] sm:$0xff]
    %v51 = vld [vmem:[%s0 + $0x120] sm:$0xff]
    %v52 = vld [vmem:[%s0 + $0x128] sm:$0xff]
    %v53 = vld [vmem:[%s0 + $0x130] sm:$0xff]
    %v54 = vld [vmem:[%s0 + $0x138] sm:$0xff]
    %v55 = vld [vmem:[%s0 + $0x140] sm:$0xff]
    %v56 = vld [vmem:[%s0 + $0x148] sm:$0xff]
    %v57 = vld [vmem:[%s0 + $0x150] sm:$0xff]
    %v58 = vld [vmem:[%s0 + $0x158] sm:$0xff]
    %v59 = vld [vmem:[%s0 + $0x160] sm:$0xff]
    %v60 = vld [vmem:[%s0 + $0x168] sm:$0xff]
    %v61 = vld [vmem:[%s0 + $0x170] sm:$0xff]
    %v62 = vld [vmem:[%s0 + $0x178] sm:$0xff]
    %v63 = vld [vmem:[%s1] sm:$0xff]
    %v64 = vld [vmem:[%s1 + $0x8] sm:$0xff]
    %v65 = vld [vmem:[%s1 + $0x10] sm:$0xff]
    %v66 = vld [vmem:[%s1 + $0x18] sm:$0xff]
    %v67 = vld [vmem:[%s1 + $0x20] sm:$0xff]
    %v68 = vld [vmem:[%s1 + $0x28] sm:$0xff]
    %v69 = vld [vmem:[%s1 + $0x30] sm:$0xff]
    %v70 = vld [vmem:[%s1 + $0x38] sm:$0xff]
    %v71 = vld [vmem:[%s1 + $0x40] sm:$0xff]
    %v72 = vld [vmem:[%s1 + $0x48] sm:$0xff]
    %v73 = vld [vmem:[%s1 + $0x50] sm:$0xff]
    %v74 = vld [vmem:[%s1 + $0x58] sm:$0xff]
    %v75 = vld [vmem:[%s1 + $0x60] sm:$0xff]
    %v76 = vld [vmem:[%s1 + $0x68] sm:$0xff]
    %v77 = vld [vmem:[%s1 + $0x70] sm:$0xff]
    %v78 = vld [vmem:[%s1 + $0x78] sm:$0xff]
    %v79 = vld [vmem:[%s1 + $0x80] sm:$0xff]
    %v80 = vld [vmem:[%s1 + $0x88] sm:$0xff]
    %v81 = vld [vmem:[%s1 + $0x90] sm:$0xff]
    %v82 = vld [vmem:[%s1 + $0x98] sm:$0xff]
    %v83 = vld [vmem:[%s1 + $0xa0] sm:$0xff]
    %v84 = vld [vmem:[%s1 + $0xa8] sm:$0xff]
    %v85 = vld [vmem:[%s1 + $0xb0] sm:$0xff]
    %v86 = vld [vmem:[%s1 + $0xb8] sm:$0xff]
    %v87 = vld [vmem:[%s1 + $0xc0] sm:$0xff]
    %v88 = vld [vmem:[%s1 + $0xc8] sm:$0xff]
    %v89 = vld [vmem:[%s1 + $0xd0] sm:$0xff]
    %v90 = vld [vmem:[%s1 + $0xd8] sm:$0xff]
    %v91 = vld [vmem:[%s1 + $0xe0] sm:$0xff]
    %v92 = vld [vmem:[%s1 + $0xe8] sm:$0xff]
    %v93 = vld [vmem:[%s1 + $0xf0] sm:$0xff]
    %v94 = vld [vmem:[%s1 + $0xf8] sm:$0xff]
    %v95 = vld [vmem:[%s1 + $0x100] sm:$0xff]
    %v96 = vld [vmem:[%s1 + $0x108] sm:$0xff]
    %v97 = vld [vmem:[%s1 + $0x110] sm:$0xff]
    %v98 = vld [vmem:[%s1 + $0x118] sm:$0xff]
    %v99 = vld [vmem:[%s1 + $0x120] sm:$0xff]
    %v100 = vld [vmem:[%s1 + $0x128] sm:$0xff]
    %v101 = vld [vmem:[%s1 + $0x130] sm:$0xff]
    %v102 = vld [vmem:[%s1 + $0x138] sm:$0xff]
    %v103 = vld [vmem:[%s1 + $0x140] sm:$0xff]
    %v104 = vld [vmem:[%s1 + $0x148] sm:$0xff]
    %v105 = vld [vmem:[%s1 + $0x150] sm:$0xff]
    %v106 = vld [vmem:[%s1 + $0x158] sm:$0xff]
    %v107 = vld [vmem:[%s1 + $0x160] sm:$0xff]
    %v108 = vld [vmem:[%s1 + $0x168] sm:$0xff]
    %v109 = vld [vmem:[%s1 + $0x170] sm:$0xff]
    %v110 = vld [vmem:[%s1 + $0x178] sm:$0xff]
    %v111 = vld [vmem:[%s1 + $0x180] sm:$0xff]
    %v112 = vld [vmem:[%s1 + $0x188] sm:$0xff]
    %v113 = vld [vmem:[%s1 + $0x190] sm:$0xff]
    %v114 = vld [vmem:[%s1 + $0x198] sm:$0xff]
    %v115 = vld [vmem:[%s1 + $0x1a0] sm:$0xff]
    %v116 = vld [vmem:[%s1 + $0x1a8] sm:$0xff]
    %v117 = vld [vmem:[%s1 + $0x1b0] sm:$0xff]
    %v118 = vld [vmem:[%s1 + $0x1b8] sm:$0xff]
    %v119 = vld [vmem:[%s1 + $0x1c0] sm:$0xff]
    %v120 = vld [vmem:[%s1 + $0x1c8] sm:$0xff]
    %v121 = vld [vmem:[%s1 + $0x1d0] sm:$0xff]
    %v122 = vld [vmem:[%s1 + $0x1d8] sm:$0xff]
    %v123 = vld [vmem:[%s1 + $0x1e0] sm:$0xff]
    %v124 = vld [vmem:[%s1 + $0x1e8] sm:$0xff]
    %v125 = vld [vmem:[%s1 + $0x1f0] sm:$0xff]
    %v126 = vld [vmem:[%s1 + $0x1f8] sm:$0xff]
    %127 = vmatpush.msra.mxu0 %v78
    %128 = vmatpush.msra.mxu0 %v77
    %129 = vmatpush.msra.mxu0 %v76
    %130 = vmatpush.msra.mxu0 %v75
    %131 = vmatpush.msra.mxu0 %v74
    %132 = vmatpush.msra.mxu0 %v73
    %133 = vmatpush.msra.mxu0 %v72
    %134 = vmatpush.msra.mxu0 %v71
    %135 = vmatpush.msra.mxu0 %v70
    %136 = vmatpush.msra.mxu0 %v69
    %137 = vmatpush.msra.mxu0 %v68
    %138 = vmatpush.msra.mxu0 %v67
    %139 = vmatpush.msra.mxu0 %v66
    %140 = vmatpush.msra.mxu0 %v65
    %141 = vmatpush.msra.mxu0 %v64
    %142 = vmatpush.msra.mxu0 %v63
    %143 = vmatmul.f32.gmra.mxu0 %v15
    %v144 = vpop.f32.mrf.mxu0
    %v145 = vadd.f32 0.0, %v144
    %146 = vmatmul.f32.gmra.mxu0 %v19
    %v147 = vpop.f32.mrf.mxu0
    %v148 = vadd.f32 0.0, %v147
    %149 = vmatmul.f32.gmra.mxu0 %v23
    %v150 = vpop.f32.mrf.mxu0
    %v151 = vadd.f32 0.0, %v150
    %152 = vmatmul.f32.gmra.mxu0 %v27
    %v153 = vpop.f32.mrf.mxu0
    %v154 = vadd.f32 0.0, %v153
    %155 = vmatmul.f32.gmra.mxu0 %v31
    %v156 = vpop.f32.mrf.mxu0
    %v157 = vadd.f32 0.0, %v156
    %158 = vmatmul.f32.gmra.mxu0 %v35
    %v159 = vpop.f32.mrf.mxu0
    %v160 = vadd.f32 0.0, %v159
    %161 = vmatmul.f32.gmra.mxu0 %v39
    %v162 = vpop.f32.mrf.mxu0
    %v163 = vadd.f32 0.0, %v162
    %164 = vmatmul.f32.gmra.mxu0 %v43
    %v165 = vpop.f32.mrf.mxu0
    %v166 = vadd.f32 0.0, %v165
    %167 = vmatmul.f32.gmra.mxu0 %v47
    %v168 = vpop.f32.mrf.mxu0
    %v169 = vadd.f32 0.0, %v168
    %170 = vmatmul.f32.gmra.mxu0 %v51
    %v171 = vpop.f32.mrf.mxu0
    %v172 = vadd.f32 0.0, %v171
    %173 = vmatmul.f32.gmra.mxu0 %v55
    %v174 = vpop.f32.mrf.mxu0
    %v175 = vadd.f32 0.0, %v174
    %176 = vmatmul.f32.gmra.mxu0 %v59
    %v177 = vpop.f32.mrf.mxu0
    %v178 = vadd.f32 0.0, %v177
    %179 = vdwg.mxu0
    %180 = vmatpush.msra.mxu0 %v94
    %181 = vmatpush.msra.mxu0 %v93
    %182 = vmatpush.msra.mxu0 %v92
    %183 = vmatpush.msra.mxu0 %v91
    %184 = vmatpush.msra.mxu0 %v90
    %185 = vmatpush.msra.mxu0 %v89
    %186 = vmatpush.msra.mxu0 %v88
    %187 = vmatpush.msra.mxu0 %v87
    %188 = vmatpush.msra.mxu0 %v86
    %189 = vmatpush.msra.mxu0 %v85
    %190 = vmatpush.msra.mxu0 %v84
    %191 = vmatpush.msra.mxu0 %v83
    %192 = vmatpush.msra.mxu0 %v82
    %193 = vmatpush.msra.mxu0 %v81
    %194 = vmatpush.msra.mxu0 %v80
    %195 = vmatpush.msra.mxu0 %v79
    %196 = vmatmul.f32.gmra.mxu0 %v16
    %v197 = vpop.f32.mrf.mxu0
    %v198 = vadd.f32 %v145, %v197
    %199 = vmatmul.f32.gmra.mxu0 %v20
    %v200 = vpop.f32.mrf.mxu0
    %v201 = vadd.f32 %v148, %v200
    %202 = vmatmul.f32.gmra.mxu0 %v24
    %v203 = vpop.f32.mrf.mxu0
    %v204 = vadd.f32 %v151, %v203
    %205 = vmatmul.f32.gmra.mxu0 %v28
    %v206 = vpop.f32.mrf.mxu0
    %v207 = vadd.f32 %v154, %v206
    %208 = vmatmul.f32.gmra.mxu0 %v32
    %v209 = vpop.f32.mrf.mxu0
    %v210 = vadd.f32 %v157, %v209
    %211 = vmatmul.f32.gmra.mxu0 %v36
    %v212 = vpop.f32.mrf.mxu0
    %v213 = vadd.f32 %v160, %v212
    %214 = vmatmul.f32.gmra.mxu0 %v40
    %v215 = vpop.f32.mrf.mxu0
    %v216 = vadd.f32 %v163, %v215
    %217 = vmatmul.f32.gmra.mxu0 %v44
    %v218 = vpop.f32.mrf.mxu0
    %v219 = vadd.f32 %v166, %v218
    %220 = vmatmul.f32.gmra.mxu0 %v48
    %v221 = vpop.f32.mrf.mxu0
    %v222 = vadd.f32 %v169, %v221
    %223 = vmatmul.f32.gmra.mxu0 %v52
    %v224 = vpop.f32.mrf.mxu0
    %v225 = vadd.f32 %v172, %v224
    %226 = vmatmul.f32.gmra.mxu0 %v56
    %v227 = vpop.f32.mrf.mxu0
    %v228 = vadd.f32 %v175, %v227
    %229 = vmatmul.f32.gmra.mxu0 %v60
    %v230 = vpop.f32.mrf.mxu0
    %v231 = vadd.f32 %v178, %v230
    %232 = vdwg.mxu0
    %233 = vmatpush.msra.mxu0 %v110
    %234 = vmatpush.msra.mxu0 %v109
    %235 = vmatpush.msra.mxu0 %v108
    %236 = vmatpush.msra.mxu0 %v107
    %237 = vmatpush.msra.mxu0 %v106
    %238 = vmatpush.msra.mxu0 %v105
    %239 = vmatpush.msra.mxu0 %v104
    %240 = vmatpush.msra.mxu0 %v103
    %241 = vmatpush.msra.mxu0 %v102
    %242 = vmatpush.msra.mxu0 %v101
    %243 = vmatpush.msra.mxu0 %v100
    %244 = vmatpush.msra.mxu0 %v99
    %245 = vmatpush.msra.mxu0 %v98
    %246 = vmatpush.msra.mxu0 %v97
    %247 = vmatpush.msra.mxu0 %v96
    %248 = vmatpush.msra.mxu0 %v95
    %249 = vmatmul.f32.gmra.mxu0 %v17
    %v250 = vpop.f32.mrf.mxu0
    %v251 = vadd.f32 %v198, %v250
    %252 = vmatmul.f32.gmra.mxu0 %v21
    %v253 = vpop.f32.mrf.mxu0
    %v254 = vadd.f32 %v201, %v253
    %255 = vmatmul.f32.gmra.mxu0 %v25
    %v256 = vpop.f32.mrf.mxu0
    %v257 = vadd.f32 %v204, %v256
    %258 = vmatmul.f32.gmra.mxu0 %v29
    %v259 = vpop.f32.mrf.mxu0
    %v260 = vadd.f32 %v207, %v259
    %261 = vmatmul.f32.gmra.mxu0 %v33
    %v262 = vpop.f32.mrf.mxu0
    %v263 = vadd.f32 %v210, %v262
    %264 = vmatmul.f32.gmra.mxu0 %v37
    %v265 = vpop.f32.mrf.mxu0
    %v266 = vadd.f32 %v213, %v265
    %267 = vmatmul.f32.gmra.mxu0 %v41
    %v268 = vpop.f32.mrf.mxu0
    %v269 = vadd.f32 %v216, %v268
    %270 = vmatmul.f32.gmra.mxu0 %v45
    %v271 = vpop.f32.mrf.mxu0
    %v272 = vadd.f32 %v219, %v271
    %273 = vmatmul.f32.gmra.mxu0 %v49
    %v274 = vpop.f32.mrf.mxu0
    %v275 = vadd.f32 %v222, %v274
    %276 = vmatmul.f32.gmra.mxu0 %v53
    %v277 = vpop.f32.mrf.mxu0
    %v278 = vadd.f32 %v225, %v277
    %279 = vmatmul.f32.gmra.mxu0 %v57
    %v280 = vpop.f32.mrf.mxu0
    %v281 = vadd.f32 %v228, %v280
    %282 = vmatmul.f32.gmra.mxu0 %v61
    %v283 = vpop.f32.mrf.mxu0
    %v284 = vadd.f32 %v231, %v283
    %285 = vdwg.mxu0
    %286 = vmatpush.msra.mxu0 %v126
    %287 = vmatpush.msra.mxu0 %v125
    %288 = vmatpush.msra.mxu0 %v124
    %289 = vmatpush.msra.mxu0 %v123
    %290 = vmatpush.msra.mxu0 %v122
    %291 = vmatpush.msra.mxu0 %v121
    %292 = vmatpush.msra.mxu0 %v120
    %293 = vmatpush.msra.mxu0 %v119
    %294 = vmatpush.msra.mxu0 %v118
    %295 = vmatpush.msra.mxu0 %v117
    %296 = vmatpush.msra.mxu0 %v116
    %297 = vmatpush.msra.mxu0 %v115
    %298 = vmatpush.msra.mxu0 %v114
    %299 = vmatpush.msra.mxu0 %v113
    %300 = vmatpush.msra.mxu0 %v112
    %301 = vmatpush.msra.mxu0 %v111
    %302 = vmatmul.f32.gmra.mxu0 %v18
    %v303 = vpop.f32.mrf.mxu0
    %v304 = vadd.f32 %v251, %v303
    %305 = vmatmul.f32.gmra.mxu0 %v22
    %v306 = vpop.f32.mrf.mxu0
    %v307 = vadd.f32 %v254, %v306
    %308 = vmatmul.f32.gmra.mxu0 %v26
    %v309 = vpop.f32.mrf.mxu0
    %v310 = vadd.f32 %v257, %v309
    %311 = vmatmul.f32.gmra.mxu0 %v30
    %v312 = vpop.f32.mrf.mxu0
    %v313 = vadd.f32 %v260, %v312
    %314 = vmatmul.f32.gmra.mxu0 %v34
    %v315 = vpop.f32.mrf.mxu0
    %v316 = vadd.f32 %v263, %v315
    %317 = vmatmul.f32.gmra.mxu0 %v38
    %v318 = vpop.f32.mrf.mxu0
    %v319 = vadd.f32 %v266, %v318
    %320 = vmatmul.f32.gmra.mxu0 %v42
    %v321 = vpop.f32.mrf.mxu0
    %v322 = vadd.f32 %v269, %v321
    %323 = vmatmul.f32.gmra.mxu0 %v46
    %v324 = vpop.f32.mrf.mxu0
    %v325 = vadd.f32 %v272, %v324
    %326 = vmatmul.f32.gmra.mxu0 %v50
    %v327 = vpop.f32.mrf.mxu0
    %v328 = vadd.f32 %v275, %v327
    %329 = vmatmul.f32.gmra.mxu0 %v54
    %v330 = vpop.f32.mrf.mxu0
    %v331 = vadd.f32 %v278, %v330
    %332 = vmatmul.f32.gmra.mxu0 %v58
    %v333 = vpop.f32.mrf.mxu0
    %v334 = vadd.f32 %v281, %v333
    %335 = vmatmul.f32.gmra.mxu0 %v62
    %v336 = vpop.f32.mrf.mxu0
    %v337 = vadd.f32 %v284, %v336
    %338 = vdwg.mxu0
    %v339 = vmax.f32 %v304, 0.0
    %v340 = vmax.f32 %v307, 0.0
    %v341 = vmax.f32 %v310, 0.0
    %v342 = vmax.f32 %v313, 0.0
    %v343 = vmax.f32 %v316, 0.0
    %v344 = vmax.f32 %v319, 0.0
    %v345 = vmax.f32 %v322, 0.0
    %v346 = vmax.f32 %v325, 0.0
    %v347 = vmax.f32 %v328, 0.0
    %v348 = vmax.f32 %v331, 0.0
    %v349 = vmax.f32 %v334, 0.0
    %v350 = vmax.f32 %v337, 0.0
    %v351 = vmul.f32 %v339, 0.0004
    %v352 = vmul.f32 %v340, 0.0004
    %v353 = vmul.f32 %v341, 0.0004
    %v354 = vmul.f32 %v342, 0.0004
    %v355 = vmul.f32 %v343, 0.0004
    %v356 = vmul.f32 %v344, 0.0004
    %v357 = vmul.f32 %v345, 0.0004
    %v358 = vmul.f32 %v346, 0.0004
    %v359 = vmul.f32 %v347, 0.0004
    %v360 = vmul.f32 %v348, 0.0004
    %v361 = vmul.f32 %v349, 0.0004
    %v362 = vmul.f32 %v350, 0.0004
    %v363 = vadd.f32 %v351, 1.6e-05
    %v364 = vadd.f32 %v352, 1.6e-05
    %v365 = vadd.f32 %v353, 1.6e-05
    %v366 = vadd.f32 %v354, 1.6e-05
    %v367 = vadd.f32 %v355, 1.6e-05
    %v368 = vadd.f32 %v356, 1.6e-05
    %v369 = vadd.f32 %v357, 1.6e-05
    %v370 = vadd.f32 %v358, 1.6e-05
    %v371 = vadd.f32 %v359, 1.6e-05
    %v372 = vadd.f32 %v360, 1.6e-05
    %v373 = vadd.f32 %v361, 1.6e-05
    %v374 = vadd.f32 %v362, 1.6e-05
    %v375 = vrsqrt.pop %v363
    %v376 = vmul.f32 %v375, %v363
    %v377 = vmul.f32 %v376, %v375
    %v378 = vmul.f32 0.5, %v377
    %v379 = vsub.f32 1.5, %v378
    %v380 = vmul.f32 %v375, %v379
    %v381 = vmul.f32 %v363, %v380
    %vm382 = vcmp.eq.f32.partialorder %v363, inf
    %v383 = vsel %vm382, %v363, %v381
    %vm384 = vcmp.eq.f32.partialorder %v363, 0.0
    %v385 = vand.u32 %v363, 2147483648
    %v386 = vsel %vm384, %v385, %v383
    %v387 = vrsqrt.pop %v364
    %v388 = vmul.f32 %v387, %v364
    %v389 = vmul.f32 %v388, %v387
    %v390 = vmul.f32 0.5, %v389
    %v391 = vsub.f32 1.5, %v390
    %v392 = vmul.f32 %v387, %v391
    %v393 = vmul.f32 %v364, %v392
    %vm394 = vcmp.eq.f32.partialorder %v364, inf
    %v395 = vsel %vm394, %v364, %v393
    %vm396 = vcmp.eq.f32.partialorder %v364, 0.0
    %v397 = vand.u32 %v364, 2147483648
    %v398 = vsel %vm396, %v397, %v395
    %v399 = vrsqrt.pop %v365
    %v400 = vmul.f32 %v399, %v365
    %v401 = vmul.f32 %v400, %v399
    %v402 = vmul.f32 0.5, %v401
    %v403 = vsub.f32 1.5, %v402
    %v404 = vmul.f32 %v399, %v403
    %v405 = vmul.f32 %v365, %v404
    %vm406 = vcmp.eq.f32.partialorder %v365, inf
    %v407 = vsel %vm406, %v365, %v405
    %vm408 = vcmp.eq.f32.partialorder %v365, 0.0
    %v409 = vand.u32 %v365, 2147483648
    %v410 = vsel %vm408, %v409, %v407
    %v411 = vrsqrt.pop %v366
    %v412 = vmul.f32 %v411, %v366
    %v413 = vmul.f32 %v412, %v411
    %v414 = vmul.f32 0.5, %v413
    %v415 = vsub.f32 1.5, %v414
    %v416 = vmul.f32 %v411, %v415
    %v417 = vmul.f32 %v366, %v416
    %vm418 = vcmp.eq.f32.partialorder %v366, inf
    %v419 = vsel %vm418, %v366, %v417
    %vm420 = vcmp.eq.f32.partialorder %v366, 0.0
    %v421 = vand.u32 %v366, 2147483648
    %v422 = vsel %vm420, %v421, %v419
    %v423 = vrsqrt.pop %v367
    %v424 = vmul.f32 %v423, %v367
    %v425 = vmul.f32 %v424, %v423
    %v426 = vmul.f32 0.5, %v425
    %v427 = vsub.f32 1.5, %v426
    %v428 = vmul.f32 %v423, %v427
    %v429 = vmul.f32 %v367, %v428
    %vm430 = vcmp.eq.f32.partialorder %v367, inf
    %v431 = vsel %vm430, %v367, %v429
    %vm432 = vcmp.eq.f32.partialorder %v367, 0.0
    %v433 = vand.u32 %v367, 2147483648
    %v434 = vsel %vm432, %v433, %v431
    %v435 = vrsqrt.pop %v368
    %v436 = vmul.f32 %v435, %v368
    %v437 = vmul.f32 %v436, %v435
    %v438 = vmul.f32 0.5, %v437
    %v439 = vsub.f32 1.5, %v438
    %v440 = vmul.f32 %v435, %v439
    %v441 = vmul.f32 %v368, %v440
    %vm442 = vcmp.eq.f32.partialorder %v368, inf
    %v443 = vsel %vm442, %v368, %v441
    %vm444 = vcmp.eq.f32.partialorder %v368, 0.0
    %v445 = vand.u32 %v368, 2147483648
    %v446 = vsel %vm444, %v445, %v443
    %v447 = vrsqrt.pop %v369
    %v448 = vmul.f32 %v447, %v369
    %v449 = vmul.f32 %v448, %v447
    %v450 = vmul.f32 0.5, %v449
    %v451 = vsub.f32 1.5, %v450
    %v452 = vmul.f32 %v447, %v451
    %v453 = vmul.f32 %v369, %v452
    %vm454 = vcmp.eq.f32.partialorder %v369, inf
    %v455 = vsel %vm454, %v369, %v453
    %vm456 = vcmp.eq.f32.partialorder %v369, 0.0
    %v457 = vand.u32 %v369, 2147483648
    %v458 = vsel %vm456, %v457, %v455
    %v459 = vrsqrt.pop %v370
    %v460 = vmul.f32 %v459, %v370
    %v461 = vmul.f32 %v460, %v459
    %v462 = vmul.f32 0.5, %v461
    %v463 = vsub.f32 1.5, %v462
    %v464 = vmul.f32 %v459, %v463
    %v465 = vmul.f32 %v370, %v464
    %vm466 = vcmp.eq.f32.partialorder %v370, inf
    %v467 = vsel %vm466, %v370, %v465
    %vm468 = vcmp.eq.f32.partialorder %v370, 0.0
    %v469 = vand.u32 %v370, 2147483648
    %v470 = vsel %vm468, %v469, %v467
    %v471 = vrsqrt.pop %v371
    %v472 = vmul.f32 %v471, %v371
    %v473 = vmul.f32 %v472, %v471
    %v474 = vmul.f32 0.5, %v473
    %v475 = vsub.f32 1.5, %v474
    %v476 = vmul.f32 %v471, %v475
    %v477 = vmul.f32 %v371, %v476
    %vm478 = vcmp.eq.f32.partialorder %v371, inf
    %v479 = vsel %vm478, %v371, %v477
    %vm480 = vcmp.eq.f32.partialorder %v371, 0.0
    %v481 = vand.u32 %v371, 2147483648
    %v482 = vsel %vm480, %v481, %v479
    %v483 = vrsqrt.pop %v372
    %v484 = vmul.f32 %v483, %v372
    %v485 = vmul.f32 %v484, %v483
    %v486 = vmul.f32 0.5, %v485
    %v487 = vsub.f32 1.5, %v486
    %v488 = vmul.f32 %v483, %v487
    %v489 = vmul.f32 %v372, %v488
    %vm490 = vcmp.eq.f32.partialorder %v372, inf
    %v491 = vsel %vm490, %v372, %v489
    %vm492 = vcmp.eq.f32.partialorder %v372, 0.0
    %v493 = vand.u32 %v372, 2147483648
    %v494 = vsel %vm492, %v493, %v491
    %v495 = vrsqrt.pop %v373
    %v496 = vmul.f32 %v495, %v373
    %v497 = vmul.f32 %v496, %v495
    %v498 = vmul.f32 0.5, %v497
    %v499 = vsub.f32 1.5, %v498
    %v500 = vmul.f32 %v495, %v499
    %v501 = vmul.f32 %v373, %v500
    %vm502 = vcmp.eq.f32.partialorder %v373, inf
    %v503 = vsel %vm502, %v373, %v501
    %vm504 = vcmp.eq.f32.partialorder %v373, 0.0
    %v505 = vand.u32 %v373, 2147483648
    %v506 = vsel %vm504, %v505, %v503
    %v507 = vrsqrt.pop %v374
    %v508 = vmul.f32 %v507, %v374
    %v509 = vmul.f32 %v508, %v507
    %v510 = vmul.f32 0.5, %v509
    %v511 = vsub.f32 1.5, %v510
    %v512 = vmul.f32 %v507, %v511
    %v513 = vmul.f32 %v374, %v512
    %vm514 = vcmp.eq.f32.partialorder %v374, inf
    %v515 = vsel %vm514, %v374, %v513
    %vm516 = vcmp.eq.f32.partialorder %v374, 0.0
    %v517 = vand.u32 %v374, 2147483648
    %v518 = vsel %vm516, %v517, %v515
    %v519 = vld [vmem:[%s2] sm:$0xff]
    %v520 = vld [vmem:[%s2 + $0x8] sm:$0xff]
    %v521 = vld [vmem:[%s2 + $0x10] sm:$0xff]
    %v522 = vld [vmem:[%s2 + $0x18] sm:$0xff]
    %v523 = vld [vmem:[%s2 + $0x20] sm:$0xff]
    %v524 = vld [vmem:[%s2 + $0x28] sm:$0xff]
    %v525 = vld [vmem:[%s2 + $0x30] sm:$0xff]
    %v526 = vld [vmem:[%s2 + $0x38] sm:$0xff]
    %v527 = vld [vmem:[%s2 + $0x40] sm:$0xff]
    %v528 = vld [vmem:[%s2 + $0x48] sm:$0xff]
    %v529 = vld [vmem:[%s2 + $0x50] sm:$0xff]
    %v530 = vld [vmem:[%s2 + $0x58] sm:$0xff]
    %v531 = vmul.f32 %v386, %v519
    %v532 = vmul.f32 %v398, %v520
    %v533 = vmul.f32 %v410, %v521
    %v534 = vmul.f32 %v422, %v522
    %v535 = vmul.f32 %v434, %v523
    %v536 = vmul.f32 %v446, %v524
    %v537 = vmul.f32 %v458, %v525
    %v538 = vmul.f32 %v470, %v526
    %v539 = vmul.f32 %v482, %v527
    %v540 = vmul.f32 %v494, %v528
    %v541 = vmul.f32 %v506, %v529
    %v542 = vmul.f32 %v518, %v530
    %v543 = vadd.f32 %v304, %v531
    %v544 = vadd.f32 %v307, %v532
    %v545 = vadd.f32 %v310, %v533
    %v546 = vadd.f32 %v313, %v534
    %v547 = vadd.f32 %v316, %v535
    %v548 = vadd.f32 %v319, %v536
    %v549 = vadd.f32 %v322, %v537
    %v550 = vadd.f32 %v325, %v538
    %v551 = vadd.f32 %v328, %v539
    %v552 = vadd.f32 %v331, %v540
    %v553 = vadd.f32 %v334, %v541
    %v554 = vadd.f32 %v337, %v542
    %vm555 = vcmask 130048
    %556 = vst.msk [vmem:[#allocation2] sm:$0xff] %vm555, %v543
    %557 = vst.msk [vmem:[#allocation2 + $0x8] sm:$0xff] %vm555, %v544
    %558 = vst.msk [vmem:[#allocation2 + $0x10] sm:$0xff] %vm555, %v545
    %559 = vst.msk [vmem:[#allocation2 + $0x18] sm:$0xff] %vm555, %v546
    %560 = vst.msk [vmem:[#allocation2 + $0x20] sm:$0xff] %vm555, %v547
    %561 = vst.msk [vmem:[#allocation2 + $0x28] sm:$0xff] %vm555, %v548
    %562 = vst.msk [vmem:[#allocation2 + $0x30] sm:$0xff] %vm555, %v549
    %563 = vst.msk [vmem:[#allocation2 + $0x38] sm:$0xff] %vm555, %v550
    %564 = vst.msk [vmem:[#allocation2 + $0x40] sm:$0xff] %vm555, %v551
    %565 = vst.msk [vmem:[#allocation2 + $0x48] sm:$0xff] %vm555, %v552
    %566 = vst.msk [vmem:[#allocation2 + $0x50] sm:$0xff] %vm555, %v553
    %567 = vst.msk [vmem:[#allocation2 + $0x58] sm:$0xff] %vm555, %v554
    // Predicated region
    $region14: #{_forward_pipeline.3} parent=1 // pred_check
      _
    $region15: #{_forward_pipeline.3} parent=1 // pred_check_branch
      %569 = sbr.rel (0) target = $region17
    $region16: #{_forward_pipeline.3} parent=1 // pred_region
      %571 = vsyncadd [#allocation3], 0
      %s572 = sshll.u32 [#allocation2], 4
      %s573 = int_to_ptr.vmem [resolvable:$true] %s572
      %s574 = sshll.u32 %s3, 4
      %s575 = int_to_ptr.hbm [resolvable:$true] %s574
      %580 = dma.vmem_to_hbm [thread:$0]  %s573, 1536, %s575, [#allocation3], 128, 128, 8
    $region17: #{_forward_pipeline.3} parent=1 // pred_fallthru
      _
    // Predicated region
    $region18: #{_forward_pipeline.3} parent=1 // pred_check
      _
    $region19: #{_forward_pipeline.3} parent=1 // pred_check_branch
      %582 = sbr.rel (0) target = $region21
    $region20: #{_forward_pipeline.3} parent=1 // pred_region
      %584 = dma.done [#allocation3], 1536
    $region21: #{_forward_pipeline.3} parent=1 // pred_fallthru
      _
    %585 = vsyncpa [#allocation3], 1

</llo_original>
